<compile_context>
chip_gen: v7x
topology: tpu7x:2x2x1
jax: 0.10.0
libtpu: 0.0.40
codegen_flags: <defaults>
</compile_context>

<pallas_src>
import numpy as np

import jax
import jax.numpy as jnp
from jax.experimental import pallas as pl
from jax.experimental.pallas import tpu as pltpu


# ---------------------------------------------------------------------------
# Parameter preprocessing (pure weight reindexing, numpy, outside jit)
# ---------------------------------------------------------------------------
def _toeplitz_w(w_kh, w_in):
    """(C_out, C_in, KW) conv slice -> (C_in*w_in, C_out*w_out) Toeplitz over W.

    act[rows, (ic, wi)] @ M == 1-D VALID conv along W, output lanes (co, wo).
    """
    c_out, c_in, kw = w_kh.shape
    w_out = w_in - kw + 1
    r = np.arange(c_in * w_in)
    c = np.arange(c_out * w_out)
    ic, wi = r // w_in, r % w_in
    co, wo = c // w_out, c % w_out
    k = wi[:, None] - wo[None, :]
    valid = (k >= 0) & (k < kw)
    vals = w_kh[co[None, :], ic[:, None], np.clip(k, 0, kw - 1)]
    return np.where(valid, vals, 0.0).astype(np.float32)


def _pool_w(n_ch, w_in):
    """(C*w_in, C*(w_in//2)) right-multiply: 2-wide average along W per channel."""
    wp = w_in // 2
    m = np.zeros((n_ch * w_in, n_ch * wp), np.float32)
    ch = np.repeat(np.arange(n_ch), wp)
    q = np.tile(np.arange(wp), n_ch)
    m[ch * w_in + 2 * q, ch * wp + q] = 0.5
    m[ch * w_in + 2 * q + 1, ch * wp + q] = 0.5
    return m


def preprocess_params(p, input_hw):
    """All activation-independent weight reindexing / folding, done once."""
    H1, W1 = input_hw
    w1 = np.asarray(p["w1"], np.float32)          # (C1, 1, K1, K1)
    w2 = np.asarray(p["w2"], np.float32)          # (C2, C1, K2, K2)
    C1, _, K1, _ = w1.shape
    C2, _, K2, _ = w2.shape
    H1o, W1o = H1 - K1 + 1, W1 - K1 + 1
    H1p, W1p = H1o // 2, W1o // 2
    H2o, W2o = H1p - K2 + 1, W1p - K2 + 1
    H2p, W2p = H2o // 2, W2o // 2
    fc1w = np.asarray(p["fc1_w"], np.float32)     # (C2*H2p*W2p, HID)
    HID = fc1w.shape[1]
    assert fc1w.shape[0] == C2 * H2p * W2p, "fc1 expects (c,h,w) flatten order"

    # conv1: Toeplitz over W; rows (kh, wi), cols (c1, wo); bias as a lane row.
    rhs1 = np.concatenate(
        [_toeplitz_w(w1[:, :, kh, :], W1) for kh in range(K1)], axis=0)
    b1_row = np.repeat(np.asarray(p["b1"], np.float32), W1o)[None, :]

    # conv2: per-kh Toeplitz over W with layer-1's 2-wide W avg-pool folded in.
    bw1 = _pool_w(C1, W1o)                                      # (C1*W1o, C1*W1p)
    rhs2f = np.stack(
        [bw1 @ _toeplitz_w(w2[:, :, kh, :], W1p) for kh in range(K2)], axis=0)

    # BatchNorm (eval) + conv2 bias folded into one scale/shift lane row.
    bn_scale = np.asarray(p["bn_scale"], np.float32)
    bn_shift = np.asarray(p["bn_shift"], np.float32)
    b2 = np.asarray(p["b2"], np.float32)
    sc2_row = np.repeat(bn_scale, W2o)[None, :]
    sh2_row = np.repeat(b2 * bn_scale + bn_shift, W2o)[None, :]

    # fc1 with 2x2 avg-pool #2, the PyTorch (c,h,w) flatten and the
    # invalid-row mask folded in:
    #   wfold[h2o, (c2, w2o), j] = 0.25 * fc1_w[(c2, h2o//2, w2o//2), j]
    # (zero for rows/cols the stride-2 pool drops or conv2 never produces).
    F2 = C2 * W2o
    h = np.arange(H1p)[:, None, None]
    c2 = np.arange(C2)[None, :, None]
    wo = np.arange(W2o)[None, None, :]
    valid = (h < 2 * H2p) & (wo < 2 * W2p)
    src = (c2 * (H2p * W2p)
           + np.minimum(h // 2, H2p - 1) * W2p
           + np.minimum(wo // 2, W2p - 1))
    wfold = np.where(valid[..., None], 0.25 * fc1w[src], 0.0)    # (H1p,C2,W2o,HID)
    wcat = (wfold.reshape(H1p, F2, HID)
            .transpose(1, 0, 2).reshape(F2, H1p * HID))          # cols = h*HID + j

    # block-diagonal decode mask and 0/1 lane-block fold matrix.
    dmask = (np.arange(H1p * HID)[None, :] // HID
             == np.arange(H1p)[:, None]).astype(np.float32)      # (H1p, H1p*HID)
    sfold = (np.arange(H1p * HID)[:, None] % HID
             == np.arange(HID)[None, :]).astype(np.float32)      # (H1p*HID, HID)

    bf16, f32 = jnp.bfloat16, jnp.float32
    return {
        "rhs1": jnp.asarray(rhs1, bf16),
        "b1": jnp.asarray(b1_row, f32),
        "rhs2f": jnp.asarray(rhs2f, bf16),
        "sc2": jnp.asarray(sc2_row, f32),
        "sh2": jnp.asarray(sh2_row, f32),
        "wcat": jnp.asarray(wcat, bf16),
        "dmask": jnp.asarray(dmask, f32),
        "sfold": jnp.asarray(sfold, bf16),
        "fc1b": jnp.asarray(np.asarray(p["fc1_b"], np.float32)[None, :], f32),
        "fc2w": jnp.asarray(p["fc2_w"], bf16),
        "fc2b": jnp.asarray(np.asarray(p["fc2_b"], np.float32)[None, :], f32),
    }


# ---------------------------------------------------------------------------
# Fused per-sample kernel: conv1 -> ReLU -> pool -> conv2(BN) -> ReLU -> pool
#                          -> flatten -> fc1 -> ReLU -> fc2 -> log_softmax
# ---------------------------------------------------------------------------
def fused_cnn_kernel(lhs1_ref, rhs1_ref, b1_ref,
                     rhs2f_ref, sc2_ref, sh2_ref,
                     wcat_ref, dmask_ref, sfold_ref,
                     fc1b_ref, fc2w_ref, fc2b_ref,
                     o_ref):
    f32, bf16 = jnp.float32, jnp.bfloat16
    H1p = dmask_ref.shape[0]
    K2 = rhs2f_ref.shape[0]

    # ---- conv1 (im2col built in the wrapper) + bias + ReLU -----------------
    y1 = jnp.dot(lhs1_ref[...], rhs1_ref[...], preferred_element_type=f32)
    y1 = jnp.maximum(y1 + b1_ref[...], 0.0)                     # (2*H1p, C1*W1o)

    # ---- 2x2 avg-pool: H on the VPU via the parity-ordered halves; the W
    #      half of the pool is folded into rhs2f (wrapper-side). -------------
    pooled = 0.5 * (y1[:H1p, :] + y1[H1p:, :])                  # (H1p, C1*W1o)

    # ---- conv2 as K2 accumulated, row-shifted matmuls (no im2col copies) ---
    pad = jnp.zeros((K2 - 1, pooled.shape[1]), f32)
    padded = jnp.concatenate([pooled, pad], axis=0)             # (H1p+K2-1, C1*W1o)
    acc = None
    for kh in range(K2):
        win = padded[kh:kh + H1p, :].astype(bf16)
        part = jnp.dot(win, rhs2f_ref[kh], preferred_element_type=f32)
        acc = part if acc is None else acc + part               # (H1p, C2*W2o)

    # ---- BatchNorm(eval) + conv2 bias (folded) + ReLU ----------------------
    y2 = jnp.maximum(acc * sc2_ref[...] + sh2_ref[...], 0.0)    # (H1p, C2*W2o)

    # ---- fc1 with avg-pool #2 + flatten + invalid-row masking folded into
    #      the weights: one MXU matmul, block-diagonal decode, 0/1 fold ------
    P = jnp.dot(y2.astype(bf16), wcat_ref[...], preferred_element_type=f32)
    rs = jnp.sum(P * dmask_ref[...], axis=0, keepdims=True)     # (1, H1p*HID)
    h1 = jnp.dot(rs.astype(bf16), sfold_ref[...], preferred_element_type=f32)
    # Dropout(p=0.2) is the identity at inference.
    h1 = jnp.maximum(h1 + fc1b_ref[...], 0.0)                   # (1, HID)

    # ---- fc2 + log_softmax --------------------------------------------------
    logits = jnp.dot(h1.astype(bf16), fc2w_ref[...],
                     preferred_element_type=f32) + fc2b_ref[...]
    m = jnp.max(logits, axis=-1, keepdims=True)
    lse = m + jnp.log(jnp.sum(jnp.exp(logits - m), axis=-1, keepdims=True))
    o_ref[...] = (logits - lse).reshape(o_ref.shape)


def cnn_forward(x, pre):
    N, c_in, H1, W1 = x.shape
    assert c_in == 1, "module fixes Conv2d(in_channels=1, ...)"
    rhs1 = pre["rhs1"]
    K1 = rhs1.shape[0] // W1
    H1o = H1 - K1 + 1
    H1p = pre["dmask"].shape[0]
    C1W1o = rhs1.shape[1]
    K2 = pre["rhs2f"].shape[0]
    C2W2o = pre["rhs2f"].shape[2]
    HID = pre["sfold"].shape[1]
    NC = pre["fc2w"].shape[1]

    # conv1 im2col over H, hoisted out of the kernel (plain XLA slicing), row
    # order (sample, parity-of-h, pooled-h) so the in-kernel H-pool is a
    # single add of two contiguous halves.  bf16 matmul operand.
    x2 = x[:, 0, :, :]                                              # (N, H1, W1)
    cols = jnp.concatenate([x2[:, kh:kh + H1o, :] for kh in range(K1)], axis=-1)
    ev = cols[:, 0:2 * H1p:2, :]
    od = cols[:, 1:2 * H1p:2, :]
    lhs1 = jnp.concatenate([ev, od], axis=1).reshape(N * 2 * H1p, K1 * W1)
    lhs1 = lhs1.astype(jnp.bfloat16)

    flops = 2 * N * (2 * H1p * (K1 * W1) * C1W1o
                     + K2 * H1p * C1W1o * C2W2o
                     + H1p * C2W2o * (H1p * HID)
                     + (H1p * HID) * HID
                     + HID * NC)
    weight_keys = ("rhs1", "b1", "rhs2f", "sc2", "sh2", "wcat", "dmask",
                   "sfold", "fc1b", "fc2w", "fc2b")
    bytes_accessed = (lhs1.size * lhs1.dtype.itemsize
                      + sum(pre[k].size * pre[k].dtype.itemsize for k in weight_keys)
                      + N * NC * 4)

    out = pl.pallas_call(
        fused_cnn_kernel,
        out_shape=jax.ShapeDtypeStruct((N, 1, NC), jnp.float32),
        grid=(N,),
        in_specs=[
            pl.BlockSpec((2 * H1p, K1 * W1), lambda n: (n, 0)),        # lhs1
            pl.BlockSpec(pre["rhs1"].shape, lambda n: (0, 0)),
            pl.BlockSpec(pre["b1"].shape, lambda n: (0, 0)),
            pl.BlockSpec(pre["rhs2f"].shape, lambda n: (0, 0, 0)),
            pl.BlockSpec(pre["sc2"].shape, lambda n: (0, 0)),
            pl.BlockSpec(pre["sh2"].shape, lambda n: (0, 0)),
            pl.BlockSpec(pre["wcat"].shape, lambda n: (0, 0)),
            pl.BlockSpec(pre["dmask"].shape, lambda n: (0, 0)),
            pl.BlockSpec(pre["sfold"].shape, lambda n: (0, 0)),
            pl.BlockSpec(pre["fc1b"].shape, lambda n: (0, 0)),
            pl.BlockSpec(pre["fc2w"].shape, lambda n: (0, 0)),
            pl.BlockSpec(pre["fc2b"].shape, lambda n: (0, 0)),
        ],
        out_specs=pl.BlockSpec((1, 1, NC), lambda n: (n, 0, 0)),
        compiler_params=pltpu.CompilerParams(
            dimension_semantics=("parallel",)),
        cost_estimate=pl.CostEstimate(flops=flops,
                                      transcendentals=N * (NC + 1),
                                      bytes_accessed=bytes_accessed),
    )(lhs1, pre["rhs1"], pre["b1"], pre["rhs2f"], pre["sc2"], pre["sh2"],
      pre["wcat"], pre["dmask"], pre["sfold"], pre["fc1b"], pre["fc2w"],
      pre["fc2b"])
    return out.reshape(N, NC)


# ---------------------------------------------------------------------------
# Pure-JAX reference (f32/HIGHEST, validation only)
# ---------------------------------------------------------------------------
def _avgpool2(y):
    n, c, h, w = y.shape
    return y[:, :, :h // 2 * 2, :w // 2 * 2].reshape(
        n, c, h // 2, 2, w // 2, 2).mean(axis=(3, 5))


def cnn_reference(x, p):
    dn = ("NCHW", "OIHW", "NCHW")
    hp = jax.lax.Precision.HIGHEST
    y = jax.lax.conv_general_dilated(x, p["w1"], (1, 1), "VALID",
                                     dimension_numbers=dn, precision=hp)
    y = jnp.maximum(y + p["b1"][None, :, None, None], 0.0)
    y = _avgpool2(y)
    y = jax.lax.conv_general_dilated(y, p["w2"], (1, 1), "VALID",
                                     dimension_numbers=dn, precision=hp)
    y = y + p["b2"][None, :, None, None]
    y = y * p["bn_scale"][None, :, None, None] + p["bn_shift"][None, :, None, None]
    y = jnp.maximum(y, 0.0)
    y = _avgpool2(y)
    flat = y.reshape(y.shape[0], -1)
    h = jnp.maximum(jnp.dot(flat, p["fc1_w"], precision=hp) + p["fc1_b"], 0.0)
    logits = jnp.dot(h, p["fc2_w"], precision=hp) + p["fc2_b"]
    return jax.nn.log_softmax(logits, axis=1)


if __name__ == "__main__":
    # Small shapes consistent with the module:
    #   (2,1,36,44) -conv5-> (2,6,32,40) -pool-> (2,6,16,20)
    #   -conv3-> (2,12,14,18) -BN/ReLU/pool-> (2,12,7,9) -> flatten 756
    N, H, W = 2, 36, 44
    Hp2, Wp2 = ((H - 4) // 2 - 2) // 2, ((W - 4) // 2 - 2) // 2
    D = 12 * Hp2 * Wp2
    HIDDEN, NUM_CLASSES = 64, 7

    key = jax.random.PRNGKey(0)
    ks = jax.random.split(key, 13)

    gamma = 1.0 + 0.1 * jax.random.normal(ks[4], (12,), jnp.float32)
    beta = 0.1 * jax.random.normal(ks[5], (12,), jnp.float32)
    run_mean = 0.1 * jax.random.normal(ks[6], (12,), jnp.float32)
    run_var = jnp.abs(jax.random.normal(ks[7], (12,), jnp.float32)) + 0.5
    eps = 1e-5
    bn_scale = gamma / jnp.sqrt(run_var + eps)
    bn_shift = beta - run_mean * bn_scale

    params = {
        "w1": 0.2 * jax.random.normal(ks[0], (6, 1, 5, 5), jnp.float32),
        "b1": 0.1 * jax.random.normal(ks[1], (6,), jnp.float32),
        "w2": 0.1 * jax.random.normal(ks[2], (12, 6, 3, 3), jnp.float32),
        "b2": 0.1 * jax.random.normal(ks[3], (12,), jnp.float32),
        "bn_scale": bn_scale,
        "bn_shift": bn_shift,
        "fc1_w": jax.random.normal(ks[8], (D, HIDDEN), jnp.float32) / np.sqrt(D),
        "fc1_b": 0.1 * jax.random.normal(ks[9], (HIDDEN,), jnp.float32),
        "fc2_w": jax.random.normal(ks[10], (HIDDEN, NUM_CLASSES), jnp.float32) / np.sqrt(HIDDEN),
        "fc2_b": 0.1 * jax.random.normal(ks[11], (NUM_CLASSES,), jnp.float32),
    }

    x = jax.random.normal(ks[12], (N, 1, H, W), jnp.float32)

    pre = preprocess_params(params, (H, W))
    fwd = jax.jit(cnn_forward)
    out = jax.block_until_ready(fwd(x, pre))
    ref = jax.block_until_ready(cnn_reference(x, params))

    assert out.shape == (N, NUM_CLASSES) and out.dtype == jnp.float32
    # Weights are stored in bf16 and the MXU runs default precision (bf16
    # operands, f32 accumulate), so compare against the f32 reference at a
    # bf16-level tolerance.
    assert bool(jnp.allclose(out, ref, atol=2.5e-2, rtol=2.5e-2)), (
        f"mismatch: max abs err {float(jnp.max(jnp.abs(out - ref)))}")

    print("KERNEL_OK")
</pallas_src>

<mosaic_0001>
module attributes {stable_mosaic.version = 11 : i64} {
  func.func @fused_cnn_kernel(%arg0: i32, %arg1: memref<32x220xbf16, #tpu.memory_space<vmem>>, %arg2: memref<220x240xbf16, #tpu.memory_space<vmem>>, %arg3: memref<1x240xf32, #tpu.memory_space<vmem>>, %arg4: memref<3x240x216xbf16, #tpu.memory_space<vmem>>, %arg5: memref<1x216xf32, #tpu.memory_space<vmem>>, %arg6: memref<1x216xf32, #tpu.memory_space<vmem>>, %arg7: memref<216x1024xbf16, #tpu.memory_space<vmem>>, %arg8: memref<16x1024xf32, #tpu.memory_space<vmem>>, %arg9: memref<1024x64xbf16, #tpu.memory_space<vmem>>, %arg10: memref<1x64xf32, #tpu.memory_space<vmem>>, %arg11: memref<64x7xbf16, #tpu.memory_space<vmem>>, %arg12: memref<1x7xf32, #tpu.memory_space<vmem>>, %arg13: memref<1x1x7xf32, #tpu.memory_space<vmem>>) attributes {dimension_semantics = [#tpu.dimension_semantics<parallel>], iteration_bounds = array<i64: 2>, scalar_prefetch = 0 : i64, scratch_operands = 0 : i64, tpu.core_type = #tpu.core_type<tc>, window_params = [{transform_indices = @transform_0, window_bounds = array<i64: 32, 220>}, {pipeline_mode = #tpu.pipeline_mode<synchronous>, transform_indices = @transform_1, window_bounds = array<i64: 220, 240>}, {pipeline_mode = #tpu.pipeline_mode<synchronous>, transform_indices = @transform_2, window_bounds = array<i64: 1, 240>}, {pipeline_mode = #tpu.pipeline_mode<synchronous>, transform_indices = @transform_3, window_bounds = array<i64: 3, 240, 216>}, {pipeline_mode = #tpu.pipeline_mode<synchronous>, transform_indices = @transform_4, window_bounds = array<i64: 1, 216>}, {pipeline_mode = #tpu.pipeline_mode<synchronous>, transform_indices = @transform_5, window_bounds = array<i64: 1, 216>}, {pipeline_mode = #tpu.pipeline_mode<synchronous>, transform_indices = @transform_6, window_bounds = array<i64: 216, 1024>}, {pipeline_mode = #tpu.pipeline_mode<synchronous>, transform_indices = @transform_7, window_bounds = array<i64: 16, 1024>}, {pipeline_mode = #tpu.pipeline_mode<synchronous>, transform_indices = @transform_8, window_bounds = array<i64: 1024, 64>}, {pipeline_mode = #tpu.pipeline_mode<synchronous>, transform_indices = @transform_9, window_bounds = array<i64: 1, 64>}, {pipeline_mode = #tpu.pipeline_mode<synchronous>, transform_indices = @transform_10, window_bounds = array<i64: 64, 7>}, {pipeline_mode = #tpu.pipeline_mode<synchronous>, transform_indices = @transform_11, window_bounds = array<i64: 1, 7>}, {transform_indices = @transform_12, window_bounds = array<i64: 1, 1, 7>}]} {
    %c0 = arith.constant 0 : index
    %c0_0 = arith.constant 0 : index
    %0 = vector.load %arg1[%c0, %c0_0] : memref<32x220xbf16, #tpu.memory_space<vmem>>, vector<32x220xbf16>
    %c0_1 = arith.constant 0 : index
    %c0_2 = arith.constant 0 : index
    %1 = vector.load %arg2[%c0_1, %c0_2] : memref<220x240xbf16, #tpu.memory_space<vmem>>, vector<220x240xbf16>
    %cst = arith.constant dense<0.000000e+00> : vector<32x240xf32>
    %2 = tpu.matmul %0, %1, %cst {dimension_numbers = #tpu.dot_dimension_numbers<[1], [0], [0], [1], [0, 0, 1, 1], [], []>} : vector<32x220xbf16>, vector<220x240xbf16>, vector<32x240xf32> -> vector<32x240xf32>
    %c0_3 = arith.constant 0 : index
    %c0_4 = arith.constant 0 : index
    %3 = vector.load %arg3[%c0_3, %c0_4] : memref<1x240xf32, #tpu.memory_space<vmem>>, vector<1x240xf32>
    %4 = vector.broadcast %3 : vector<1x240xf32> to vector<32x240xf32>
    %5 = arith.addf %2, %4 : vector<32x240xf32>
    %cst_5 = arith.constant 0.000000e+00 : f32
    %6 = vector.broadcast %cst_5 : f32 to vector<32x240xf32>
    %7 = arith.maximumf %5, %6 : vector<32x240xf32>
    %8 = vector.extract_strided_slice %7 {offsets = [0, 0], sizes = [16, 240], strides = [1, 1]} : vector<32x240xf32> to vector<16x240xf32>
    %9 = vector.extract_strided_slice %7 {offsets = [16, 0], sizes = [16, 240], strides = [1, 1]} : vector<32x240xf32> to vector<16x240xf32>
    %10 = arith.addf %8, %9 : vector<16x240xf32>
    %cst_6 = arith.constant 5.000000e-01 : f32
    %11 = vector.broadcast %cst_6 : f32 to vector<16x240xf32>
    %12 = arith.mulf %11, %10 : vector<16x240xf32>
    %cst_7 = arith.constant 0.000000e+00 : f32
    %13 = vector.broadcast %cst_7 : f32 to vector<2x240xf32>
    %14 = tpu.concatenate %12, %13 in 0 : vector<16x240xf32>, vector<2x240xf32> -> vector<18x240xf32>
    %15 = vector.extract_strided_slice %14 {offsets = [0, 0], sizes = [16, 240], strides = [1, 1]} : vector<18x240xf32> to vector<16x240xf32>
    %16 = arith.truncf %15 : vector<16x240xf32> to vector<16x240xbf16>
    %c0_8 = arith.constant 0 : index
    %c0_9 = arith.constant 0 : index
    %c0_10 = arith.constant 0 : index
    %17 = vector.load %arg4[%c0_8, %c0_9, %c0_10] : memref<3x240x216xbf16, #tpu.memory_space<vmem>>, vector<1x240x216xbf16>
    %18 = vector.shape_cast %17 : vector<1x240x216xbf16> to vector<240x216xbf16>
    %cst_11 = arith.constant dense<0.000000e+00> : vector<16x216xf32>
    %19 = tpu.matmul %16, %18, %cst_11 {dimension_numbers = #tpu.dot_dimension_numbers<[1], [0], [0], [1], [0, 0, 1, 1], [], []>} : vector<16x240xbf16>, vector<240x216xbf16>, vector<16x216xf32> -> vector<16x216xf32>
    %20 = vector.extract_strided_slice %14 {offsets = [1, 0], sizes = [16, 240], strides = [1, 1]} : vector<18x240xf32> to vector<16x240xf32>
    %21 = arith.truncf %20 : vector<16x240xf32> to vector<16x240xbf16>
    %c1 = arith.constant 1 : index
    %c0_12 = arith.constant 0 : index
    %c0_13 = arith.constant 0 : index
    %22 = vector.load %arg4[%c1, %c0_12, %c0_13] : memref<3x240x216xbf16, #tpu.memory_space<vmem>>, vector<1x240x216xbf16>
    %23 = vector.shape_cast %22 : vector<1x240x216xbf16> to vector<240x216xbf16>
    %cst_14 = arith.constant dense<0.000000e+00> : vector<16x216xf32>
    %24 = tpu.matmul %21, %23, %cst_14 {dimension_numbers = #tpu.dot_dimension_numbers<[1], [0], [0], [1], [0, 0, 1, 1], [], []>} : vector<16x240xbf16>, vector<240x216xbf16>, vector<16x216xf32> -> vector<16x216xf32>
    %25 = arith.addf %19, %24 : vector<16x216xf32>
    %26 = vector.extract_strided_slice %14 {offsets = [2, 0], sizes = [16, 240], strides = [1, 1]} : vector<18x240xf32> to vector<16x240xf32>
    %27 = arith.truncf %26 : vector<16x240xf32> to vector<16x240xbf16>
    %c2 = arith.constant 2 : index
    %c0_15 = arith.constant 0 : index
    %c0_16 = arith.constant 0 : index
    %28 = vector.load %arg4[%c2, %c0_15, %c0_16] : memref<3x240x216xbf16, #tpu.memory_space<vmem>>, vector<1x240x216xbf16>
    %29 = vector.shape_cast %28 : vector<1x240x216xbf16> to vector<240x216xbf16>
    %cst_17 = arith.constant dense<0.000000e+00> : vector<16x216xf32>
    %30 = tpu.matmul %27, %29, %cst_17 {dimension_numbers = #tpu.dot_dimension_numbers<[1], [0], [0], [1], [0, 0, 1, 1], [], []>} : vector<16x240xbf16>, vector<240x216xbf16>, vector<16x216xf32> -> vector<16x216xf32>
    %31 = arith.addf %25, %30 : vector<16x216xf32>
    %c0_18 = arith.constant 0 : index
    %c0_19 = arith.constant 0 : index
    %32 = vector.load %arg5[%c0_18, %c0_19] : memref<1x216xf32, #tpu.memory_space<vmem>>, vector<1x216xf32>
    %33 = vector.broadcast %32 : vector<1x216xf32> to vector<16x216xf32>
    %34 = arith.mulf %31, %33 : vector<16x216xf32>
    %c0_20 = arith.constant 0 : index
    %c0_21 = arith.constant 0 : index
    %35 = vector.load %arg6[%c0_20, %c0_21] : memref<1x216xf32, #tpu.memory_space<vmem>>, vector<1x216xf32>
    %36 = vector.broadcast %35 : vector<1x216xf32> to vector<16x216xf32>
    %37 = arith.addf %34, %36 : vector<16x216xf32>
    %cst_22 = arith.constant 0.000000e+00 : f32
    %38 = vector.broadcast %cst_22 : f32 to vector<16x216xf32>
    %39 = arith.maximumf %37, %38 : vector<16x216xf32>
    %40 = arith.truncf %39 : vector<16x216xf32> to vector<16x216xbf16>
    %c0_23 = arith.constant 0 : index
    %c0_24 = arith.constant 0 : index
    %41 = vector.load %arg7[%c0_23, %c0_24] : memref<216x1024xbf16, #tpu.memory_space<vmem>>, vector<216x1024xbf16>
    %cst_25 = arith.constant dense<0.000000e+00> : vector<16x1024xf32>
    %42 = tpu.matmul %40, %41, %cst_25 {dimension_numbers = #tpu.dot_dimension_numbers<[1], [0], [0], [1], [0, 0, 1, 1], [], []>} : vector<16x216xbf16>, vector<216x1024xbf16>, vector<16x1024xf32> -> vector<16x1024xf32>
    %c0_26 = arith.constant 0 : index
    %c0_27 = arith.constant 0 : index
    %43 = vector.load %arg8[%c0_26, %c0_27] : memref<16x1024xf32, #tpu.memory_space<vmem>>, vector<16x1024xf32>
    %44 = arith.mulf %42, %43 : vector<16x1024xf32>
    %cst_28 = arith.constant dense<0.000000e+00> : vector<1024xf32>
    %45 = vector.multi_reduction <add>, %44, %cst_28 [0] : vector<16x1024xf32> to vector<1024xf32>
    %46 = vector.shape_cast %45 : vector<1024xf32> to vector<1x1024xf32>
    %47 = arith.truncf %46 : vector<1x1024xf32> to vector<1x1024xbf16>
    %c0_29 = arith.constant 0 : index
    %c0_30 = arith.constant 0 : index
    %48 = vector.load %arg9[%c0_29, %c0_30] : memref<1024x64xbf16, #tpu.memory_space<vmem>>, vector<1024x64xbf16>
    %cst_31 = arith.constant dense<0.000000e+00> : vector<1x64xf32>
    %49 = tpu.matmul %47, %48, %cst_31 {dimension_numbers = #tpu.dot_dimension_numbers<[1], [0], [0], [1], [0, 0, 1, 1], [], []>} : vector<1x1024xbf16>, vector<1024x64xbf16>, vector<1x64xf32> -> vector<1x64xf32>
    %c0_32 = arith.constant 0 : index
    %c0_33 = arith.constant 0 : index
    %50 = vector.load %arg10[%c0_32, %c0_33] : memref<1x64xf32, #tpu.memory_space<vmem>>, vector<1x64xf32>
    %51 = arith.addf %49, %50 : vector<1x64xf32>
    %cst_34 = arith.constant 0.000000e+00 : f32
    %52 = vector.broadcast %cst_34 : f32 to vector<1x64xf32>
    %53 = arith.maximumf %51, %52 : vector<1x64xf32>
    %54 = arith.truncf %53 : vector<1x64xf32> to vector<1x64xbf16>
    %c0_35 = arith.constant 0 : index
    %c0_36 = arith.constant 0 : index
    %55 = vector.load %arg11[%c0_35, %c0_36] : memref<64x7xbf16, #tpu.memory_space<vmem>>, vector<64x7xbf16>
    %cst_37 = arith.constant dense<0.000000e+00> : vector<1x7xf32>
    %56 = tpu.matmul %54, %55, %cst_37 {dimension_numbers = #tpu.dot_dimension_numbers<[1], [0], [0], [1], [0, 0, 1, 1], [], []>} : vector<1x64xbf16>, vector<64x7xbf16>, vector<1x7xf32> -> vector<1x7xf32>
    %c0_38 = arith.constant 0 : index
    %c0_39 = arith.constant 0 : index
    %57 = vector.load %arg12[%c0_38, %c0_39] : memref<1x7xf32, #tpu.memory_space<vmem>>, vector<1x7xf32>
    %58 = arith.addf %56, %57 : vector<1x7xf32>
    %cst_40 = arith.constant dense<0xFF800000> : vector<1xf32>
    %59 = vector.multi_reduction <maximumf>, %58, %cst_40 [1] : vector<1x7xf32> to vector<1xf32>
    %60 = vector.shape_cast %59 : vector<1xf32> to vector<1x1xf32>
    %61 = vector.broadcast %60 : vector<1x1xf32> to vector<1x7xf32>
    %62 = arith.subf %58, %61 : vector<1x7xf32>
    %63 = math.exp %62 : vector<1x7xf32>
    %cst_41 = arith.constant dense<0.000000e+00> : vector<1xf32>
    %64 = vector.multi_reduction <add>, %63, %cst_41 [1] : vector<1x7xf32> to vector<1xf32>
    %65 = vector.shape_cast %64 : vector<1xf32> to vector<1x1xf32>
    %66 = math.log %65 : vector<1x1xf32>
    %67 = arith.addf %60, %66 : vector<1x1xf32>
    %68 = vector.broadcast %67 : vector<1x1xf32> to vector<1x7xf32>
    %69 = arith.subf %58, %68 : vector<1x7xf32>
    %70 = vector.shape_cast %69 : vector<1x7xf32> to vector<1x1x7xf32>
    %c0_42 = arith.constant 0 : index
    %c0_43 = arith.constant 0 : index
    %c0_44 = arith.constant 0 : index
    %71 = vector.load %arg13[%c0_42, %c0_43, %c0_44] : memref<1x1x7xf32, #tpu.memory_space<vmem>>, vector<1x1x7xf32>
    tpu.vector_store %arg13[%c0_42, %c0_43, %c0_44], %70 {strides = array<i32>} : memref<1x1x7xf32, #tpu.memory_space<vmem>>, vector<1x1x7xf32>,
    return
  }
  func.func @transform_0(%arg0: i32) -> (i32, i32) {
    %c0_i32 = arith.constant 0 : i32
    %c0_i32_0 = arith.constant 0 : i32
    return %arg0, %c0_i32 : i32, i32
  }
  func.func @transform_1(%arg0: i32) -> (i32, i32) {
    %c0_i32 = arith.constant 0 : i32
    %c0_i32_0 = arith.constant 0 : i32
    %c0_i32_1 = arith.constant 0 : i32
    return %c0_i32, %c0_i32_0 : i32, i32
  }
  func.func @transform_2(%arg0: i32) -> (i32, i32) {
    %c0_i32 = arith.constant 0 : i32
    %c0_i32_0 = arith.constant 0 : i32
    %c0_i32_1 = arith.constant 0 : i32
    return %c0_i32, %c0_i32_0 : i32, i32
  }
  func.func @transform_3(%arg0: i32) -> (i32, i32, i32) {
    %c0_i32 = arith.constant 0 : i32
    %c0_i32_0 = arith.constant 0 : i32
    %c0_i32_1 = arith.constant 0 : i32
    %c0_i32_2 = arith.constant 0 : i32
    return %c0_i32, %c0_i32_0, %c0_i32_1 : i32, i32, i32
  }
  func.func @transform_4(%arg0: i32) -> (i32, i32) {
    %c0_i32 = arith.constant 0 : i32
    %c0_i32_0 = arith.constant 0 : i32
    %c0_i32_1 = arith.constant 0 : i32
    return %c0_i32, %c0_i32_0 : i32, i32
  }
  func.func @transform_5(%arg0: i32) -> (i32, i32) {
    %c0_i32 = arith.constant 0 : i32
    %c0_i32_0 = arith.constant 0 : i32
    %c0_i32_1 = arith.constant 0 : i32
    return %c0_i32, %c0_i32_0 : i32, i32
  }
  func.func @transform_6(%arg0: i32) -> (i32, i32) {
    %c0_i32 = arith.constant 0 : i32
    %c0_i32_0 = arith.constant 0 : i32
    %c0_i32_1 = arith.constant 0 : i32
    return %c0_i32, %c0_i32_0 : i32, i32
  }
  func.func @transform_7(%arg0: i32) -> (i32, i32) {
    %c0_i32 = arith.constant 0 : i32
    %c0_i32_0 = arith.constant 0 : i32
    %c0_i32_1 = arith.constant 0 : i32
    return %c0_i32, %c0_i32_0 : i32, i32
  }
  func.func @transform_8(%arg0: i32) -> (i32, i32) {
    %c0_i32 = arith.constant 0 : i32
    %c0_i32_0 = arith.constant 0 : i32
    %c0_i32_1 = arith.constant 0 : i32
    return %c0_i32, %c0_i32_0 : i32, i32
  }
  func.func @transform_9(%arg0: i32) -> (i32, i32) {
    %c0_i32 = arith.constant 0 : i32
    %c0_i32_0 = arith.constant 0 : i32
    %c0_i32_1 = arith.constant 0 : i32
    return %c0_i32, %c0_i32_0 : i32, i32
  }
  func.func @transform_10(%arg0: i32) -> (i32, i32) {
    %c0_i32 = arith.constant 0 : i32
    %c0_i32_0 = arith.constant 0 : i32
    %c0_i32_1 = arith.constant 0 : i32
    return %c0_i32, %c0_i32_0 : i32, i32
  }
  func.func @transform_11(%arg0: i32) -> (i32, i32) {
    %c0_i32 = arith.constant 0 : i32
    %c0_i32_0 = arith.constant 0 : i32
    %c0_i32_1 = arith.constant 0 : i32
    return %c0_i32, %c0_i32_0 : i32, i32
  }
  func.func @transform_12(%arg0: i32) -> (i32, i32, i32) {
    %c0_i32 = arith.constant 0 : i32
    %c0_i32_0 = arith.constant 0 : i32
    %c0_i32_1 = arith.constant 0 : i32
    return %arg0, %c0_i32, %c0_i32_0 : i32, i32, i32
  }
}

</mosaic_0001>

<llo_original>
// kernel: cnn_forward.1
$region0: #{cnn_forward.1}
  #allocation0 [shape = 'u32[]', space=smem, size = 0x4, offset = 0x4, fixed_abs, tag = 'smem constant byte address 0x4 - core index']
  #allocation1 [shape = 'u32[144,128]{1,0:T(1,128)}', space=vmem, size = 0x12000, scoped, tag = 'internal scratch']
  %s0 = inlined_call_operand.vmem [shape: bf16[64,220], index: 0, kind: input, shape index: {}]
  %s1 = inlined_call_operand.vmem [shape: bf16[220,240], index: 1, kind: input, shape index: {}]
  %s2 = inlined_call_operand.vmem [shape: f32[1,240], index: 2, kind: input, shape index: {}]
  %s3 = inlined_call_operand.vmem [shape: bf16[3,240,216], index: 3, kind: input, shape index: {}]
  %s4 = inlined_call_operand.vmem [shape: f32[1,216], index: 4, kind: input, shape index: {}]
  %s5 = inlined_call_operand.vmem [shape: f32[1,216], index: 5, kind: input, shape index: {}]
  %s6 = inlined_call_operand.vmem [shape: bf16[216,1024], index: 6, kind: input, shape index: {}]
  %s7 = inlined_call_operand.vmem [shape: f32[16,1024], index: 7, kind: input, shape index: {}]
  %s8 = inlined_call_operand.vmem [shape: bf16[1024,64], index: 8, kind: input, shape index: {}]
  %s9 = inlined_call_operand.vmem [shape: f32[1,64], index: 9, kind: input, shape index: {}]
  %s10 = inlined_call_operand.vmem [shape: bf16[64,7], index: 10, kind: input, shape index: {}]
  %s11 = inlined_call_operand.vmem [shape: f32[1,7], index: 11, kind: input, shape index: {}]
  %s12 = inlined_call_operand.hbm [shape: f32[2,1,7], index: 12, kind: output, shape index: {}]
  %s13 = sld [smem:[#allocation0]]
  $region81: #{cnn_forward.1} parent=0
    _
  %s15 = ssub.s32 1, %s13
  %s16 = scalar_select 0, %s15, %s13
  $region1: #{cnn_forward.1} parent=0
    #allocation2 [shape = 'u8[1024]{0}', space=vmem, size = 0x400, scoped, tag = 'output window, operand 0']
    #allocation3 [shape = 's32[2]{0}', space=sflag, size = 0x8, scoped, tag = 'scoped memory for cnn_forward.1']
    %17 = vsyncpa [#allocation3], 0
    %s18 = scalar_lea.sflag [#allocation3], 1
    %19 = vsyncpa %s18, 0
    loop: start=0, step=1, limit=4
    $region2: #{cnn_forward.1} parent=1 // loop_pre_header
      _
    $region3: #{cnn_forward.1} parent=1 // loop_header
      %s21 = sphi 0, %s25
      %p22 = scmp.ge.s32.totalorder %s21, 4
      %s31 = sphi 0, %s33
      %s34 = sphi 0, %s31
      %s35 = sphi 0, %s34
      %s51 = sphi 0, %s35
      %s55 = sphi 0, %s55
      %s57 = sphi 0, %s55
      %s58 = sphi 0, %s57
      %s72 = sphi 0, %s58
      %s76 = sphi 0, %s76
      %s78 = sphi 0, %s76
      %s79 = sphi 0, %s78
      %s93 = sphi 0, %s79
      %s97 = sphi 0, %s97
      %s99 = sphi 0, %s97
      %s100 = sphi 0, %s99
      %s114 = sphi 0, %s100
      %s118 = sphi 0, %s118
      %s120 = sphi 0, %s118
      %s121 = sphi 0, %s120
      %s135 = sphi 0, %s121
      %s139 = sphi 0, %s139
      %s141 = sphi 0, %s139
      %s142 = sphi 0, %s141
      %s156 = sphi 0, %s142
      %s160 = sphi 0, %s160
      %s162 = sphi 0, %s160
      %s163 = sphi 0, %s162
      %s177 = sphi 0, %s163
      %s181 = sphi 0, %s181
      %s183 = sphi 0, %s181
      %s184 = sphi 0, %s183
      %s198 = sphi 0, %s184
      %s202 = sphi 0, %s202
      %s204 = sphi 0, %s202
      %s205 = sphi 0, %s204
      %s219 = sphi 0, %s205
      %s223 = sphi 0, %s223
      %s225 = sphi 0, %s223
      %s226 = sphi 0, %s225
      %s240 = sphi 0, %s226
      %s244 = sphi 0, %s244
      %s246 = sphi 0, %s244
      %s247 = sphi 0, %s246
      %s261 = sphi 0, %s247
      %s265 = sphi 0, %s265
      %s267 = sphi 0, %s265
      %s268 = sphi 0, %s267
      %s282 = sphi 0, %s268
      %s288 = sphi 0, %s290
      %s291 = sphi 0, %s288
      %s292 = sphi 0, %s291
      %s308 = sphi 0, %s292
    $region4: #{cnn_forward.1} parent=1 // loop_header_branch
      %24 = sbr.rel (%p22) target = $region8
    $region5: #{cnn_forward.1} parent=1 // loop_body
      %s26 = ssub.s32 %s21, 1
      %s27 = ssub.s32 %s21, 2
      %s28 = sadd.s32 %s21, 1
      %s29 = ssub.s32 %s21, %s28
      %p30 = scmp.eq.s32.totalorder %s29, 0
      %s32 = sadd.s32 %s31, 1
      %s33 = scalar_select %p30, %s31, %s32
      %p36 = pneg %p30
      %p37 = scmp.eq.s32.totalorder %s21, 1
      %p38 = por %p36, %p37
      %p39 = scmp.ne.s32.totalorder %s31, %s34
      %p40 = scmp.eq.s32.totalorder %s21, 0
      %p41 = por %p39, %p40
      %p42 = scmp.ne.s32.totalorder %s31, %s34
      %p43 = scmp.eq.s32.totalorder %s26, 1
      %p44 = por %p42, %p43
      %p45 = scmp.ne.s32.totalorder %s34, %s35
      %p46 = scmp.eq.s32.totalorder %s26, 0
      %p47 = por %p45, %p46
      %p48 = scmp.ne.s32.totalorder %s34, %s35
      %p49 = scmp.eq.s32.totalorder %s27, 1
      %p50 = por %p48, %p49
      %p52 = scmp.ne.s32.totalorder %s35, %s51
      %p53 = scmp.eq.s32.totalorder %s27, 0
      %p54 = por %p52, %p53
      %s56 = sadd.s32 %s55, 1
      %p59 = scmp.eq.s32.totalorder %s21, 1
      %p60 = scmp.ne.s32.totalorder %s55, %s57
      %p61 = scmp.eq.s32.totalorder %s21, 0
      %p62 = por %p60, %p61
      %p63 = scmp.ne.s32.totalorder %s55, %s57
      %p64 = scmp.eq.s32.totalorder %s26, 1
      %p65 = por %p63, %p64
      %p66 = scmp.ne.s32.totalorder %s57, %s58
      %p67 = scmp.eq.s32.totalorder %s26, 0
      %p68 = por %p66, %p67
      %p69 = scmp.ne.s32.totalorder %s57, %s58
      %p70 = scmp.eq.s32.totalorder %s27, 1
      %p71 = por %p69, %p70
      %p73 = scmp.ne.s32.totalorder %s58, %s72
      %p74 = scmp.eq.s32.totalorder %s27, 0
      %p75 = por %p73, %p74
      %s77 = sadd.s32 %s76, 1
      %p80 = scmp.eq.s32.totalorder %s21, 1
      %p81 = scmp.ne.s32.totalorder %s76, %s78
      %p82 = scmp.eq.s32.totalorder %s21, 0
      %p83 = por %p81, %p82
      %p84 = scmp.ne.s32.totalorder %s76, %s78
      %p85 = scmp.eq.s32.totalorder %s26, 1
      %p86 = por %p84, %p85
      %p87 = scmp.ne.s32.totalorder %s78, %s79
      %p88 = scmp.eq.s32.totalorder %s26, 0
      %p89 = por %p87, %p88
      %p90 = scmp.ne.s32.totalorder %s78, %s79
      %p91 = scmp.eq.s32.totalorder %s27, 1
      %p92 = por %p90, %p91
      %p94 = scmp.ne.s32.totalorder %s79, %s93
      %p95 = scmp.eq.s32.totalorder %s27, 0
      %p96 = por %p94, %p95
      %s98 = sadd.s32 %s97, 1
      %p101 = scmp.eq.s32.totalorder %s21, 1
      %p102 = scmp.ne.s32.totalorder %s97, %s99
      %p103 = scmp.eq.s32.totalorder %s21, 0
      %p104 = por %p102, %p103
      %p105 = scmp.ne.s32.totalorder %s97, %s99
      %p106 = scmp.eq.s32.totalorder %s26, 1
      %p107 = por %p105, %p106
      %p108 = scmp.ne.s32.totalorder %s99, %s100
      %p109 = scmp.eq.s32.totalorder %s26, 0
      %p110 = por %p108, %p109
      %p111 = scmp.ne.s32.totalorder %s99, %s100
      %p112 = scmp.eq.s32.totalorder %s27, 1
      %p113 = por %p111, %p112
      %p115 = scmp.ne.s32.totalorder %s100, %s114
      %p116 = scmp.eq.s32.totalorder %s27, 0
      %p117 = por %p115, %p116
      %s119 = sadd.s32 %s118, 1
      %p122 = scmp.eq.s32.totalorder %s21, 1
      %p123 = scmp.ne.s32.totalorder %s118, %s120
      %p124 = scmp.eq.s32.totalorder %s21, 0
      %p125 = por %p123, %p124
      %p126 = scmp.ne.s32.totalorder %s118, %s120
      %p127 = scmp.eq.s32.totalorder %s26, 1
      %p128 = por %p126, %p127
      %p129 = scmp.ne.s32.totalorder %s120, %s121
      %p130 = scmp.eq.s32.totalorder %s26, 0
      %p131 = por %p129, %p130
      %p132 = scmp.ne.s32.totalorder %s120, %s121
      %p133 = scmp.eq.s32.totalorder %s27, 1
      %p134 = por %p132, %p133
      %p136 = scmp.ne.s32.totalorder %s121, %s135
      %p137 = scmp.eq.s32.totalorder %s27, 0
      %p138 = por %p136, %p137
      %s140 = sadd.s32 %s139, 1
      %p143 = scmp.eq.s32.totalorder %s21, 1
      %p144 = scmp.ne.s32.totalorder %s139, %s141
      %p145 = scmp.eq.s32.totalorder %s21, 0
      %p146 = por %p144, %p145
      %p147 = scmp.ne.s32.totalorder %s139, %s141
      %p148 = scmp.eq.s32.totalorder %s26, 1
      %p149 = por %p147, %p148
      %p150 = scmp.ne.s32.totalorder %s141, %s142
      %p151 = scmp.eq.s32.totalorder %s26, 0
      %p152 = por %p150, %p151
      %p153 = scmp.ne.s32.totalorder %s141, %s142
      %p154 = scmp.eq.s32.totalorder %s27, 1
      %p155 = por %p153, %p154
      %p157 = scmp.ne.s32.totalorder %s142, %s156
      %p158 = scmp.eq.s32.totalorder %s27, 0
      %p159 = por %p157, %p158
      %s161 = sadd.s32 %s160, 1
      %p164 = scmp.eq.s32.totalorder %s21, 1
      %p165 = scmp.ne.s32.totalorder %s160, %s162
      %p166 = scmp.eq.s32.totalorder %s21, 0
      %p167 = por %p165, %p166
      %p168 = scmp.ne.s32.totalorder %s160, %s162
      %p169 = scmp.eq.s32.totalorder %s26, 1
      %p170 = por %p168, %p169
      %p171 = scmp.ne.s32.totalorder %s162, %s163
      %p172 = scmp.eq.s32.totalorder %s26, 0
      %p173 = por %p171, %p172
      %p174 = scmp.ne.s32.totalorder %s162, %s163
      %p175 = scmp.eq.s32.totalorder %s27, 1
      %p176 = por %p174, %p175
      %p178 = scmp.ne.s32.totalorder %s163, %s177
      %p179 = scmp.eq.s32.totalorder %s27, 0
      %p180 = por %p178, %p179
      %s182 = sadd.s32 %s181, 1
      %p185 = scmp.eq.s32.totalorder %s21, 1
      %p186 = scmp.ne.s32.totalorder %s181, %s183
      %p187 = scmp.eq.s32.totalorder %s21, 0
      %p188 = por %p186, %p187
      %p189 = scmp.ne.s32.totalorder %s181, %s183
      %p190 = scmp.eq.s32.totalorder %s26, 1
      %p191 = por %p189, %p190
      %p192 = scmp.ne.s32.totalorder %s183, %s184
      %p193 = scmp.eq.s32.totalorder %s26, 0
      %p194 = por %p192, %p193
      %p195 = scmp.ne.s32.totalorder %s183, %s184
      %p196 = scmp.eq.s32.totalorder %s27, 1
      %p197 = por %p195, %p196
      %p199 = scmp.ne.s32.totalorder %s184, %s198
      %p200 = scmp.eq.s32.totalorder %s27, 0
      %p201 = por %p199, %p200
      %s203 = sadd.s32 %s202, 1
      %p206 = scmp.eq.s32.totalorder %s21, 1
      %p207 = scmp.ne.s32.totalorder %s202, %s204
      %p208 = scmp.eq.s32.totalorder %s21, 0
      %p209 = por %p207, %p208
      %p210 = scmp.ne.s32.totalorder %s202, %s204
      %p211 = scmp.eq.s32.totalorder %s26, 1
      %p212 = por %p210, %p211
      %p213 = scmp.ne.s32.totalorder %s204, %s205
      %p214 = scmp.eq.s32.totalorder %s26, 0
      %p215 = por %p213, %p214
      %p216 = scmp.ne.s32.totalorder %s204, %s205
      %p217 = scmp.eq.s32.totalorder %s27, 1
      %p218 = por %p216, %p217
      %p220 = scmp.ne.s32.totalorder %s205, %s219
      %p221 = scmp.eq.s32.totalorder %s27, 0
      %p222 = por %p220, %p221
      %s224 = sadd.s32 %s223, 1
      %p227 = scmp.eq.s32.totalorder %s21, 1
      %p228 = scmp.ne.s32.totalorder %s223, %s225
      %p229 = scmp.eq.s32.totalorder %s21, 0
      %p230 = por %p228, %p229
      %p231 = scmp.ne.s32.totalorder %s223, %s225
      %p232 = scmp.eq.s32.totalorder %s26, 1
      %p233 = por %p231, %p232
      %p234 = scmp.ne.s32.totalorder %s225, %s226
      %p235 = scmp.eq.s32.totalorder %s26, 0
      %p236 = por %p234, %p235
      %p237 = scmp.ne.s32.totalorder %s225, %s226
      %p238 = scmp.eq.s32.totalorder %s27, 1
      %p239 = por %p237, %p238
      %p241 = scmp.ne.s32.totalorder %s226, %s240
      %p242 = scmp.eq.s32.totalorder %s27, 0
      %p243 = por %p241, %p242
      %s245 = sadd.s32 %s244, 1
      %p248 = scmp.eq.s32.totalorder %s21, 1
      %p249 = scmp.ne.s32.totalorder %s244, %s246
      %p250 = scmp.eq.s32.totalorder %s21, 0
      %p251 = por %p249, %p250
      %p252 = scmp.ne.s32.totalorder %s244, %s246
      %p253 = scmp.eq.s32.totalorder %s26, 1
      %p254 = por %p252, %p253
      %p255 = scmp.ne.s32.totalorder %s246, %s247
      %p256 = scmp.eq.s32.totalorder %s26, 0
      %p257 = por %p255, %p256
      %p258 = scmp.ne.s32.totalorder %s246, %s247
      %p259 = scmp.eq.s32.totalorder %s27, 1
      %p260 = por %p258, %p259
      %p262 = scmp.ne.s32.totalorder %s247, %s261
      %p263 = scmp.eq.s32.totalorder %s27, 0
      %p264 = por %p262, %p263
      %s266 = sadd.s32 %s265, 1
      %p269 = scmp.eq.s32.totalorder %s21, 1
      %p270 = scmp.ne.s32.totalorder %s265, %s267
      %p271 = scmp.eq.s32.totalorder %s21, 0
      %p272 = por %p270, %p271
      %p273 = scmp.ne.s32.totalorder %s265, %s267
      %p274 = scmp.eq.s32.totalorder %s26, 1
      %p275 = por %p273, %p274
      %p276 = scmp.ne.s32.totalorder %s267, %s268
      %p277 = scmp.eq.s32.totalorder %s26, 0
      %p278 = por %p276, %p277
      %p279 = scmp.ne.s32.totalorder %s267, %s268
      %p280 = scmp.eq.s32.totalorder %s27, 1
      %p281 = por %p279, %p280
      %p283 = scmp.ne.s32.totalorder %s268, %s282
      %p284 = scmp.eq.s32.totalorder %s27, 0
      %p285 = por %p283, %p284
      %s286 = ssub.s32 %s21, %s28
      %p287 = scmp.eq.s32.totalorder %s286, 0
      %s289 = sadd.s32 %s288, 1
      %s290 = scalar_select %p287, %s288, %s289
      %p293 = pneg %p287
      %p294 = scmp.eq.s32.totalorder %s21, 1
      %p295 = por %p293, %p294
      %p296 = scmp.ne.s32.totalorder %s288, %s291
      %p297 = scmp.eq.s32.totalorder %s21, 0
      %p298 = por %p296, %p297
      %p299 = scmp.ne.s32.totalorder %s288, %s291
      %p300 = scmp.eq.s32.totalorder %s26, 1
      %p301 = por %p299, %p300
      %p302 = scmp.ne.s32.totalorder %s291, %s292
      %p303 = scmp.eq.s32.totalorder %s26, 0
      %p304 = por %p302, %p303
      %p305 = scmp.ne.s32.totalorder %s291, %s292
      %p306 = scmp.eq.s32.totalorder %s27, 1
      %p307 = por %p305, %p306
      %p309 = scmp.ne.s32.totalorder %s292, %s308
      %p310 = scmp.eq.s32.totalorder %s27, 0
      %p311 = por %p309, %p310
      %p312 = scmp.le.s32.totalorder 1, %s21
      %p313 = scmp.lt.s32.totalorder %s21, 3
      %p314 = pnand %p312, %p313
      %p315 = pneg %p314
      // Predicated region
      $region9: #{cnn_forward.1} parent=5 // pred_check
        _
      $region10: #{cnn_forward.1} parent=5 // pred_check_branch
        %317 = sbr.rel (%p314) target = $region12
      $region11: #{cnn_forward.1} parent=5 // pred_region
        %s318 = ssub.s32 %s21, 1
        // Predicated region
        $region13: #{cnn_forward.1} parent=11 // pred_check
          %p319 = pneg %p68
        $region14: #{cnn_forward.1} parent=11 // pred_check_branch
          %321 = sbr.rel (%p319) target = $region16
        $region15: #{cnn_forward.1} parent=11 // pred_region
          _
        $region16: #{cnn_forward.1} parent=11 // pred_fallthru
          _
        // Predicated region
        $region17: #{cnn_forward.1} parent=11 // pred_check
          %p322 = pneg %p89
        $region18: #{cnn_forward.1} parent=11 // pred_check_branch
          %324 = sbr.rel (%p322) target = $region20
        $region19: #{cnn_forward.1} parent=11 // pred_region
          _
        $region20: #{cnn_forward.1} parent=11 // pred_fallthru
          _
        // Predicated region
        $region21: #{cnn_forward.1} parent=11 // pred_check
          %p325 = pneg %p110
        $region22: #{cnn_forward.1} parent=11 // pred_check_branch
          %327 = sbr.rel (%p325) target = $region24
        $region23: #{cnn_forward.1} parent=11 // pred_region
          _
        $region24: #{cnn_forward.1} parent=11 // pred_fallthru
          _
        // Predicated region
        $region25: #{cnn_forward.1} parent=11 // pred_check
          %p328 = pneg %p131
        $region26: #{cnn_forward.1} parent=11 // pred_check_branch
          %330 = sbr.rel (%p328) target = $region28
        $region27: #{cnn_forward.1} parent=11 // pred_region
          _
        $region28: #{cnn_forward.1} parent=11 // pred_fallthru
          _
        // Predicated region
        $region29: #{cnn_forward.1} parent=11 // pred_check
          %p331 = pneg %p152
        $region30: #{cnn_forward.1} parent=11 // pred_check_branch
          %333 = sbr.rel (%p331) target = $region32
        $region31: #{cnn_forward.1} parent=11 // pred_region
          _
        $region32: #{cnn_forward.1} parent=11 // pred_fallthru
          _
        // Predicated region
        $region33: #{cnn_forward.1} parent=11 // pred_check
          %p334 = pneg %p173
        $region34: #{cnn_forward.1} parent=11 // pred_check_branch
          %336 = sbr.rel (%p334) target = $region36
        $region35: #{cnn_forward.1} parent=11 // pred_region
          _
        $region36: #{cnn_forward.1} parent=11 // pred_fallthru
          _
        // Predicated region
        $region37: #{cnn_forward.1} parent=11 // pred_check
          %p337 = pneg %p194
        $region38: #{cnn_forward.1} parent=11 // pred_check_branch
          %339 = sbr.rel (%p337) target = $region40
        $region39: #{cnn_forward.1} parent=11 // pred_region
          _
        $region40: #{cnn_forward.1} parent=11 // pred_fallthru
          _
        // Predicated region
        $region41: #{cnn_forward.1} parent=11 // pred_check
          %p340 = pneg %p215
        $region42: #{cnn_forward.1} parent=11 // pred_check_branch
          %342 = sbr.rel (%p340) target = $region44
        $region43: #{cnn_forward.1} parent=11 // pred_region
          _
        $region44: #{cnn_forward.1} parent=11 // pred_fallthru
          _
        // Predicated region
        $region45: #{cnn_forward.1} parent=11 // pred_check
          %p343 = pneg %p236
        $region46: #{cnn_forward.1} parent=11 // pred_check_branch
          %345 = sbr.rel (%p343) target = $region48
        $region47: #{cnn_forward.1} parent=11 // pred_region
          _
        $region48: #{cnn_forward.1} parent=11 // pred_fallthru
          _
        // Predicated region
        $region49: #{cnn_forward.1} parent=11 // pred_check
          %p346 = pneg %p257
        $region50: #{cnn_forward.1} parent=11 // pred_check_branch
          %348 = sbr.rel (%p346) target = $region52
        $region51: #{cnn_forward.1} parent=11 // pred_region
          _
        $region52: #{cnn_forward.1} parent=11 // pred_fallthru
          _
        // Predicated region
        $region53: #{cnn_forward.1} parent=11 // pred_check
          %p349 = pneg %p278
        $region54: #{cnn_forward.1} parent=11 // pred_check_branch
          %351 = sbr.rel (%p349) target = $region56
        $region55: #{cnn_forward.1} parent=11 // pred_region
          _
        $region56: #{cnn_forward.1} parent=11 // pred_fallthru
          _
      $region12: #{cnn_forward.1} parent=5 // pred_fallthru
        _
      %p352 = scmp.lt.s32.totalorder %s21, 2
      // Predicated region
      $region57: #{cnn_forward.1} parent=5 // pred_check
        %p353 = pneg %p352
      $region58: #{cnn_forward.1} parent=5 // pred_check_branch
        %355 = sbr.rel (%p353) target = $region60
      $region59: #{cnn_forward.1} parent=5 // pred_region
        // Predicated region
        $region61: #{cnn_forward.1} parent=59 // pred_check
          %p356 = pneg %p41
        $region62: #{cnn_forward.1} parent=59 // pred_check_branch
          %358 = sbr.rel (%p356) target = $region64
        $region63: #{cnn_forward.1} parent=59 // pred_region
          %s359 = smul.u32 4, %s21
          %p360 = scmp.lt.s32.totalorder %s359, 7
          %s361 = scalar_select %p360, %s359, 7
          %s362 = smul.addr %s361, 2
          %s363 = smul.addr %s362, 4
          %s364 = scalar_lea.vmem %s0, %s363
          %s365 = smul.u32 4, %s21
        $region64: #{cnn_forward.1} parent=59 // pred_fallthru
          _
      $region60: #{cnn_forward.1} parent=5 // pred_fallthru
        _
      %p366 = scmp.le.s32.totalorder 1, %s21
      %p367 = scmp.lt.s32.totalorder %s21, 3
      %p368 = pnand %p366, %p367
      %p369 = pneg %p368
      // Predicated region
      $region65: #{cnn_forward.1} parent=5 // pred_check
        _
      $region66: #{cnn_forward.1} parent=5 // pred_check_branch
        %371 = sbr.rel (%p368) target = $region68
      $region67: #{cnn_forward.1} parent=5 // pred_region
        %s372 = ssub.s32 %s21, 1
        %s373 = smul.u32 4, %s26
        %p374 = scmp.lt.s32.totalorder %s373, 7
        %s375 = scalar_select %p374, %s373, 7
        %s376 = smul.addr %s375, 2
        %s377 = smul.addr %s376, 4
        %s378 = scalar_lea.vmem %s0, %s377
        %p379 = pneg %p47
        %p380 = pneg %p44
        %p381 = pneg %p68
        %p382 = pneg %p65
        %p383 = pneg %p89
        %p384 = pneg %p86
        %p385 = pneg %p110
        %p386 = pneg %p107
        %p387 = pneg %p131
        %p388 = pneg %p128
        %p389 = pneg %p152
        %p390 = pneg %p149
        %p391 = pneg %p173
        %p392 = pneg %p170
        %p393 = pneg %p194
        %p394 = pneg %p191
        %p395 = pneg %p215
        %p396 = pneg %p212
        %p397 = pneg %p236
        %p398 = pneg %p233
        %p399 = pneg %p257
        %p400 = pneg %p254
        %p401 = pneg %p278
        %p402 = pneg %p275
        %p403 = pneg %p304
        %p404 = pneg %p301
        %s405 = sand.u32 %s291, 1
        %s406 = scalar_lea.sflag [#allocation3], %s405
        %s407 = sand.u32 %s291, 1
        %s408 = scalar_lea.vmem [#allocation2], %s407
        %s409 = smul.u32 4, %s26
        %p410 = scmp.lt.s32.totalorder %s409, 7
        %s411 = scalar_select %p410, %s409, 7
        %s412 = smul.addr %s411, 2
        %s413 = smul.addr %s412, 4
        %s414 = scalar_lea.vmem %s0, %s413
        %s415 = smul.u32 4, %s26
        %v417 = vld [vmem:[%s414] sm:$0xff]
        %v418 = vld [vmem:[%s414 + $0x8] sm:$0xff]
        %v419 = vld [vmem:[%s414 + $0x10] sm:$0xff]
        %v420 = vld [vmem:[%s414 + $0x18] sm:$0xff]
        %v421 = vld [vmem:[%s1] sm:$0xff]
        %v422 = vld [vmem:[%s1 + $0x8] sm:$0xff]
        %v423 = vld [vmem:[%s1 + $0x10] sm:$0xff]
        %v424 = vld [vmem:[%s1 + $0x18] sm:$0xff]
        %v425 = vld [vmem:[%s1 + $0x20] sm:$0xff]
        %v426 = vld [vmem:[%s1 + $0x28] sm:$0xff]
        %v427 = vld [vmem:[%s1 + $0x30] sm:$0xff]
        %v428 = vld [vmem:[%s1 + $0x38] sm:$0xff]
        %v429 = vld [vmem:[%s1 + $0x40] sm:$0xff]
        %v430 = vld [vmem:[%s1 + $0x48] sm:$0xff]
        %v431 = vld [vmem:[%s1 + $0x50] sm:$0xff]
        %v432 = vld [vmem:[%s1 + $0x58] sm:$0xff]
        %v433 = vld [vmem:[%s1 + $0x60] sm:$0xff]
        %v434 = vld [vmem:[%s1 + $0x68] sm:$0xff]
        %v435 = vld [vmem:[%s1 + $0x70] sm:$0xff]
        %v436 = vld [vmem:[%s1 + $0x78] sm:$0xff]
        %v437 = vld [vmem:[%s1 + $0x80] sm:$0xff]
        %v438 = vld [vmem:[%s1 + $0x88] sm:$0xff]
        %v439 = vld [vmem:[%s1 + $0x90] sm:$0xff]
        %v440 = vld [vmem:[%s1 + $0x98] sm:$0xff]
        %v441 = vld [vmem:[%s1 + $0xa0] sm:$0xff]
        %v442 = vld [vmem:[%s1 + $0xa8] sm:$0xff]
        %v443 = vld [vmem:[%s1 + $0xb0] sm:$0xff]
        %v444 = vld [vmem:[%s1 + $0xb8] sm:$0xff]
        %v445 = vld [vmem:[%s1 + $0xc0] sm:$0xff]
        %v446 = vld [vmem:[%s1 + $0xc8] sm:$0xff]
        %v447 = vld [vmem:[%s1 + $0xd0] sm:$0xff]
        %v448 = vld [vmem:[%s1 + $0xd8] sm:$0x33]
        %v449 = vld [vmem:[%s2] sm:$0x3]
        %v451 = vlaneseq
        %v452 = vshrl.u32 %v451, 7
        %v453 = vsub.s32 0, %v452
        %v454 = vrot.slane %v449, %v453
        %v455 = vlaneseq
        %v456 = vshrl.u32 %v455, 7
        %v457 = vsub.s32 1, %v456
        %v458 = vrot.slane %v449, %v457
        %v465 = vunpack.c.l.b16 %v417
        %v466 = vunpack.c.h.b16 %v417
        %v467 = vunpack.c.l.b16 %v418
        %v468 = vunpack.c.h.b16 %v418
        %v469 = vunpack.c.l.b16 %v419
        %v470 = vunpack.c.h.b16 %v419
        %v471 = vunpack.c.l.b16 %v420
        %v472 = vunpack.c.h.b16 %v420
        %v473 = vpack.c.b16 %v467, %v465
        %v474 = vpack.c.b16 %v468, %v466
        %v475 = vpack.c.b16 %v471, %v469
        %v476 = vpack.c.b16 %v472, %v470
        %v507 = vunpack.c.l.b16 %v421
        %v508 = vunpack.c.h.b16 %v421
        %v509 = vunpack.c.l.b16 %v422
        %v510 = vunpack.c.h.b16 %v422
        %v511 = vunpack.c.l.b16 %v423
        %v512 = vunpack.c.h.b16 %v423
        %v513 = vunpack.c.l.b16 %v424
        %v514 = vunpack.c.h.b16 %v424
        %v515 = vunpack.c.l.b16 %v425
        %v516 = vunpack.c.h.b16 %v425
        %v517 = vunpack.c.l.b16 %v426
        %v518 = vunpack.c.h.b16 %v426
        %v519 = vunpack.c.l.b16 %v427
        %v520 = vunpack.c.h.b16 %v427
        %v521 = vunpack.c.l.b16 %v428
        %v522 = vunpack.c.h.b16 %v428
        %v523 = vunpack.c.l.b16 %v429
        %v524 = vunpack.c.h.b16 %v429
        %v525 = vunpack.c.l.b16 %v430
        %v526 = vunpack.c.h.b16 %v430
        %v527 = vunpack.c.l.b16 %v431
        %v528 = vunpack.c.h.b16 %v431
        %v529 = vunpack.c.l.b16 %v432
        %v530 = vunpack.c.h.b16 %v432
        %v531 = vunpack.c.l.b16 %v433
        %v532 = vunpack.c.h.b16 %v433
        %v533 = vunpack.c.l.b16 %v434
        %v534 = vunpack.c.h.b16 %v434
        %v535 = vunpack.c.l.b16 %v435
        %v536 = vunpack.c.h.b16 %v435
        %v537 = vunpack.c.l.b16 %v436
        %v538 = vunpack.c.h.b16 %v436
        %v539 = vunpack.c.l.b16 %v437
        %v540 = vunpack.c.h.b16 %v437
        %v541 = vunpack.c.l.b16 %v438
        %v542 = vunpack.c.h.b16 %v438
        %v543 = vunpack.c.l.b16 %v439
        %v544 = vunpack.c.h.b16 %v439
        %v545 = vunpack.c.l.b16 %v440
        %v546 = vunpack.c.h.b16 %v440
        %v547 = vunpack.c.l.b16 %v441
        %v548 = vunpack.c.h.b16 %v441
        %v549 = vunpack.c.l.b16 %v442
        %v550 = vunpack.c.h.b16 %v442
        %v551 = vunpack.c.l.b16 %v443
        %v552 = vunpack.c.h.b16 %v443
        %v553 = vunpack.c.l.b16 %v444
        %v554 = vunpack.c.h.b16 %v444
        %v555 = vunpack.c.l.b16 %v445
        %v556 = vunpack.c.h.b16 %v445
        %v557 = vunpack.c.l.b16 %v446
        %v558 = vunpack.c.h.b16 %v446
        %v559 = vunpack.c.l.b16 %v447
        %v560 = vunpack.c.h.b16 %v447
        %v561 = vunpack.c.l.b16 %v448
        %v562 = vunpack.c.h.b16 %v448
        %v563 = vpack.c.b16 %v509, %v507
        %v564 = vpack.c.b16 %v510, %v508
        %v565 = vpack.c.b16 %v513, %v511
        %v566 = vpack.c.b16 %v514, %v512
        %v567 = vpack.c.b16 %v517, %v515
        %v568 = vpack.c.b16 %v518, %v516
        %v569 = vpack.c.b16 %v521, %v519
        %v570 = vpack.c.b16 %v522, %v520
        %v571 = vpack.c.b16 %v525, %v523
        %v572 = vpack.c.b16 %v526, %v524
        %v573 = vpack.c.b16 %v529, %v527
        %v574 = vpack.c.b16 %v530, %v528
        %v575 = vpack.c.b16 %v533, %v531
        %v576 = vpack.c.b16 %v534, %v532
        %v577 = vpack.c.b16 %v537, %v535
        %v578 = vpack.c.b16 %v538, %v536
        %v579 = vpack.c.b16 %v541, %v539
        %v580 = vpack.c.b16 %v542, %v540
        %v581 = vpack.c.b16 %v545, %v543
        %v582 = vpack.c.b16 %v546, %v544
        %v583 = vpack.c.b16 %v549, %v547
        %v584 = vpack.c.b16 %v550, %v548
        %v585 = vpack.c.b16 %v553, %v551
        %v586 = vpack.c.b16 %v554, %v552
        %v587 = vpack.c.b16 %v557, %v555
        %v588 = vpack.c.b16 %v558, %v556
        %v589 = vpack.c.b16 %v561, %v559
        %v590 = vpack.c.b16 %v562, %v560
        %vm617 = vcmask 752640
        %v619 = vsel %vm617, %v474, 0
        %v622 = vsel %vm617, %v476, 0
        %vm624 = vcmask 1045504
        %v626 = vsel %vm624, %v589, 0
        %v629 = vsel %vm624, %v590, 0
        %631 = vmatprep.subr.bf16.mxu0 %v564
        %632 = vmatpush1.bf16.msra.mxu0 %v563
        %633 = vmatprep.subr.bf16.mxu0 %v566
        %634 = vmatpush1.bf16.msra.mxu0 %v565
        %635 = vmatprep.subr.bf16.mxu0 %v568
        %636 = vmatpush1.bf16.msra.mxu0 %v567
        %637 = vmatprep.subr.bf16.mxu0 %v570
        %638 = vmatpush1.bf16.msra.mxu0 %v569
        %639 = vmatprep.subr.bf16.mxu0 %v572
        %640 = vmatpush1.bf16.msra.mxu0 %v571
        %641 = vmatprep.subr.bf16.mxu0 %v574
        %642 = vmatpush1.bf16.msra.mxu0 %v573
        %643 = vmatprep.subr.bf16.mxu0 %v576
        %644 = vmatpush1.bf16.msra.mxu0 %v575
        %645 = vmatprep.subr.bf16.mxu0 %v578
        %646 = vmatpush1.bf16.msra.mxu0 %v577
        %647 = vmatprep.subr.bf16.mxu0 %v580
        %648 = vmatpush1.bf16.msra.mxu0 %v579
        %649 = vmatprep.subr.bf16.mxu0 %v582
        %650 = vmatpush1.bf16.msra.mxu0 %v581
        %651 = vmatprep.subr.bf16.mxu0 %v584
        %652 = vmatpush1.bf16.msra.mxu0 %v583
        %653 = vmatprep.subr.bf16.mxu0 %v586
        %654 = vmatpush1.bf16.msra.mxu0 %v585
        %655 = vmatprep.subr.bf16.mxu0 %v588
        %656 = vmatpush1.bf16.msra.mxu0 %v587
        %657 = vmatprep.subr.bf16.mxu0 %v629
        %658 = vmatpush1.bf16.msra.mxu0 %v626
        %659 = vmatprep.subr.bf16.mxu0 0
        %660 = vmatpush1.bf16.msra.mxu0 0
        %661 = vmatprep.subr.bf16.mxu0 0
        %662 = vmatpush1.bf16.msra.mxu0 0
        %663 = vmatprep.mubr.bf16.mxu0 %v619
        %664 = vmatmul.mubr.bf16.gmra.mrb[0].mxu0 %v473
        %v665 = vpop.f32.mrb[0].mxu0
        %v666 = vadd.f32 %v454, %v665
        %v667 = vpop.f32.mrb[0].mxu0
        %v668 = vadd.f32 %v458, %v667
        %v669 = vpop.f32.mrb[0].mxu0
        %v670 = vadd.f32 %v454, %v669
        %v671 = vpop.f32.mrb[0].mxu0
        %v672 = vadd.f32 %v458, %v671
        %673 = vmatprep.mubr.bf16.mxu0 %v622
        %674 = vmatmul.mubr.bf16.gmra.mrb[0].mxu0 %v475
        %v675 = vpop.f32.mrb[0].mxu0
        %v676 = vadd.f32 %v454, %v675
        %v677 = vpop.f32.mrb[0].mxu0
        %v678 = vadd.f32 %v458, %v677
        %v679 = vpop.f32.mrb[0].mxu0
        %v680 = vadd.f32 %v454, %v679
        %v681 = vpop.f32.mrb[0].mxu0
        %v682 = vadd.f32 %v458, %v681
        %683 = vdwg.mxu0
        %v684 = vmax.f32 %v666, 0.0
        %v685 = vmax.f32 %v668, 0.0
        %v686 = vmax.f32 %v670, 0.0
        %v687 = vmax.f32 %v672, 0.0
        %v688 = vmax.f32 %v676, 0.0
        %v689 = vmax.f32 %v678, 0.0
        %v690 = vmax.f32 %v680, 0.0
        %v691 = vmax.f32 %v682, 0.0
        %v692 = vadd.f32 %v684, %v688
        %v693 = vadd.f32 %v685, %v689
        %v694 = vadd.f32 %v686, %v690
        %v695 = vadd.f32 %v687, %v691
        %v696 = vmul.f32 %v692, 0.5
        %v697 = vmul.f32 %v693, 0.5
        %v698 = vmul.f32 %v694, 0.5
        %v699 = vmul.f32 %v695, 0.5
        %v700 = vpack.c.bf16 %v698, %v696
        %v701 = vpack.c.bf16 %v699, %v697
        %v702 = vld [vmem:[%s3] sm:$0xff]
        %v703 = vld [vmem:[%s3 + $0x8] sm:$0xff]
        %v704 = vld [vmem:[%s3 + $0x10] sm:$0xff]
        %v705 = vld [vmem:[%s3 + $0x18] sm:$0xff]
        %v706 = vld [vmem:[%s3 + $0x20] sm:$0xff]
        %v707 = vld [vmem:[%s3 + $0x28] sm:$0xff]
        %v708 = vld [vmem:[%s3 + $0x30] sm:$0xff]
        %v709 = vld [vmem:[%s3 + $0x38] sm:$0xff]
        %v710 = vld [vmem:[%s3 + $0x40] sm:$0xff]
        %v711 = vld [vmem:[%s3 + $0x48] sm:$0xff]
        %v712 = vld [vmem:[%s3 + $0x50] sm:$0xff]
        %v713 = vld [vmem:[%s3 + $0x58] sm:$0xff]
        %v714 = vld [vmem:[%s3 + $0x60] sm:$0xff]
        %v715 = vld [vmem:[%s3 + $0x68] sm:$0xff]
        %v716 = vld [vmem:[%s3 + $0x70] sm:$0xff]
        %v717 = vld [vmem:[%s3 + $0x78] sm:$0xff]
        %v718 = vld [vmem:[%s3 + $0x80] sm:$0xff]
        %v719 = vld [vmem:[%s3 + $0x88] sm:$0xff]
        %v720 = vld [vmem:[%s3 + $0x90] sm:$0xff]
        %v721 = vld [vmem:[%s3 + $0x98] sm:$0xff]
        %v722 = vld [vmem:[%s3 + $0xa0] sm:$0xff]
        %v723 = vld [vmem:[%s3 + $0xa8] sm:$0xff]
        %v724 = vld [vmem:[%s3 + $0xb0] sm:$0xff]
        %v725 = vld [vmem:[%s3 + $0xb8] sm:$0xff]
        %v726 = vld [vmem:[%s3 + $0xc0] sm:$0xff]
        %v727 = vld [vmem:[%s3 + $0xc8] sm:$0xff]
        %v728 = vld [vmem:[%s3 + $0xd0] sm:$0xff]
        %v729 = vld [vmem:[%s3 + $0xd8] sm:$0xff]
        %v730 = vld [vmem:[%s3 + $0xe0] sm:$0xff]
        %v731 = vld [vmem:[%s3 + $0xe8] sm:$0xff]
        %v732 = vpack.c.bf16 0.0, 0.0
        %s733 = scalar_lea.vmem %s3, 240
        %v734 = vld [vmem:[%s733] sm:$0xff]
        %v735 = vld [vmem:[%s733 + $0x8] sm:$0xff]
        %v736 = vld [vmem:[%s733 + $0x10] sm:$0xff]
        %v737 = vld [vmem:[%s733 + $0x18] sm:$0xff]
        %v738 = vld [vmem:[%s733 + $0x20] sm:$0xff]
        %v739 = vld [vmem:[%s733 + $0x28] sm:$0xff]
        %v740 = vld [vmem:[%s733 + $0x30] sm:$0xff]
        %v741 = vld [vmem:[%s733 + $0x38] sm:$0xff]
        %v742 = vld [vmem:[%s733 + $0x40] sm:$0xff]
        %v743 = vld [vmem:[%s733 + $0x48] sm:$0xff]
        %v744 = vld [vmem:[%s733 + $0x50] sm:$0xff]
        %v745 = vld [vmem:[%s733 + $0x58] sm:$0xff]
        %v746 = vld [vmem:[%s733 + $0x60] sm:$0xff]
        %v747 = vld [vmem:[%s733 + $0x68] sm:$0xff]
        %v748 = vld [vmem:[%s733 + $0x70] sm:$0xff]
        %v749 = vld [vmem:[%s733 + $0x78] sm:$0xff]
        %v750 = vld [vmem:[%s733 + $0x80] sm:$0xff]
        %v751 = vld [vmem:[%s733 + $0x88] sm:$0xff]
        %v752 = vld [vmem:[%s733 + $0x90] sm:$0xff]
        %v753 = vld [vmem:[%s733 + $0x98] sm:$0xff]
        %v754 = vld [vmem:[%s733 + $0xa0] sm:$0xff]
        %v755 = vld [vmem:[%s733 + $0xa8] sm:$0xff]
        %v756 = vld [vmem:[%s733 + $0xb0] sm:$0xff]
        %v757 = vld [vmem:[%s733 + $0xb8] sm:$0xff]
        %v758 = vld [vmem:[%s733 + $0xc0] sm:$0xff]
        %v759 = vld [vmem:[%s733 + $0xc8] sm:$0xff]
        %v760 = vld [vmem:[%s733 + $0xd0] sm:$0xff]
        %v761 = vld [vmem:[%s733 + $0xd8] sm:$0xff]
        %v762 = vld [vmem:[%s733 + $0xe0] sm:$0xff]
        %v763 = vld [vmem:[%s733 + $0xe8] sm:$0xff]
        %vm764 = vsmask.f32 7424
        %v766 = vshrl.u32 %v700, 16
        %v768 = vshll.u32 %v700, 16
        %v770 = vrot.slane %v768, 1
        %v771 = vor.u32 %v766, %v770
        %v773 = vshll.u32 %v732, 16
        %v775 = vrot.slane %v773, 1
        %v776 = vsel %vm764, %v771, %v775
        %v778 = vshrl.u32 %v701, 16
        %v780 = vshll.u32 %v701, 16
        %v782 = vrot.slane %v780, 1
        %v783 = vor.u32 %v778, %v782
        %v784 = vsel %vm764, %v783, %v775
        %v816 = vunpack.c.l.b16 %v734
        %v817 = vunpack.c.h.b16 %v734
        %v818 = vunpack.c.l.b16 %v735
        %v819 = vunpack.c.h.b16 %v735
        %v820 = vunpack.c.l.b16 %v736
        %v821 = vunpack.c.h.b16 %v736
        %v822 = vunpack.c.l.b16 %v737
        %v823 = vunpack.c.h.b16 %v737
        %v824 = vunpack.c.l.b16 %v738
        %v825 = vunpack.c.h.b16 %v738
        %v826 = vunpack.c.l.b16 %v739
        %v827 = vunpack.c.h.b16 %v739
        %v828 = vunpack.c.l.b16 %v740
        %v829 = vunpack.c.h.b16 %v740
        %v830 = vunpack.c.l.b16 %v741
        %v831 = vunpack.c.h.b16 %v741
        %v832 = vunpack.c.l.b16 %v742
        %v833 = vunpack.c.h.b16 %v742
        %v834 = vunpack.c.l.b16 %v743
        %v835 = vunpack.c.h.b16 %v743
        %v836 = vunpack.c.l.b16 %v744
        %v837 = vunpack.c.h.b16 %v744
        %v838 = vunpack.c.l.b16 %v745
        %v839 = vunpack.c.h.b16 %v745
        %v840 = vunpack.c.l.b16 %v746
        %v841 = vunpack.c.h.b16 %v746
        %v842 = vunpack.c.l.b16 %v747
        %v843 = vunpack.c.h.b16 %v747
        %v844 = vunpack.c.l.b16 %v748
        %v845 = vunpack.c.h.b16 %v748
        %v846 = vunpack.c.l.b16 %v749
        %v847 = vunpack.c.h.b16 %v749
        %v848 = vunpack.c.l.b16 %v750
        %v849 = vunpack.c.h.b16 %v750
        %v850 = vunpack.c.l.b16 %v751
        %v851 = vunpack.c.h.b16 %v751
        %v852 = vunpack.c.l.b16 %v752
        %v853 = vunpack.c.h.b16 %v752
        %v854 = vunpack.c.l.b16 %v753
        %v855 = vunpack.c.h.b16 %v753
        %v856 = vunpack.c.l.b16 %v754
        %v857 = vunpack.c.h.b16 %v754
        %v858 = vunpack.c.l.b16 %v755
        %v859 = vunpack.c.h.b16 %v755
        %v860 = vunpack.c.l.b16 %v756
        %v861 = vunpack.c.h.b16 %v756
        %v862 = vunpack.c.l.b16 %v757
        %v863 = vunpack.c.h.b16 %v757
        %v864 = vunpack.c.l.b16 %v758
        %v865 = vunpack.c.h.b16 %v758
        %v866 = vunpack.c.l.b16 %v759
        %v867 = vunpack.c.h.b16 %v759
        %v868 = vunpack.c.l.b16 %v760
        %v869 = vunpack.c.h.b16 %v760
        %v870 = vunpack.c.l.b16 %v761
        %v871 = vunpack.c.h.b16 %v761
        %v872 = vunpack.c.l.b16 %v762
        %v873 = vunpack.c.h.b16 %v762
        %v874 = vunpack.c.l.b16 %v763
        %v875 = vunpack.c.h.b16 %v763
        %v876 = vpack.c.b16 %v818, %v816
        %v877 = vpack.c.b16 %v819, %v817
        %v878 = vpack.c.b16 %v822, %v820
        %v879 = vpack.c.b16 %v823, %v821
        %v880 = vpack.c.b16 %v826, %v824
        %v881 = vpack.c.b16 %v827, %v825
        %v882 = vpack.c.b16 %v830, %v828
        %v883 = vpack.c.b16 %v831, %v829
        %v884 = vpack.c.b16 %v834, %v832
        %v885 = vpack.c.b16 %v835, %v833
        %v886 = vpack.c.b16 %v838, %v836
        %v887 = vpack.c.b16 %v839, %v837
        %v888 = vpack.c.b16 %v842, %v840
        %v889 = vpack.c.b16 %v843, %v841
        %v890 = vpack.c.b16 %v846, %v844
        %v891 = vpack.c.b16 %v847, %v845
        %v892 = vpack.c.b16 %v850, %v848
        %v893 = vpack.c.b16 %v851, %v849
        %v894 = vpack.c.b16 %v854, %v852
        %v895 = vpack.c.b16 %v855, %v853
        %v896 = vpack.c.b16 %v858, %v856
        %v897 = vpack.c.b16 %v859, %v857
        %v898 = vpack.c.b16 %v862, %v860
        %v899 = vpack.c.b16 %v863, %v861
        %v900 = vpack.c.b16 %v866, %v864
        %v901 = vpack.c.b16 %v867, %v865
        %v902 = vpack.c.b16 %v870, %v868
        %v903 = vpack.c.b16 %v871, %v869
        %v904 = vpack.c.b16 %v874, %v872
        %v905 = vpack.c.b16 %v875, %v873
        %vm936 = vcmask 916480
        %v938 = vsel %vm936, %v784, 0
        %940 = vmatprep.subr.bf16.mxu0 %v877
        %941 = vmatpush1.bf16.msra.mxu0 %v876
        %942 = vmatprep.subr.bf16.mxu0 %v879
        %943 = vmatpush1.bf16.msra.mxu0 %v878
        %944 = vmatprep.subr.bf16.mxu0 %v881
        %945 = vmatpush1.bf16.msra.mxu0 %v880
        %946 = vmatprep.subr.bf16.mxu0 %v883
        %947 = vmatpush1.bf16.msra.mxu0 %v882
        %948 = vmatprep.subr.bf16.mxu0 %v885
        %949 = vmatpush1.bf16.msra.mxu0 %v884
        %950 = vmatprep.subr.bf16.mxu0 %v887
        %951 = vmatpush1.bf16.msra.mxu0 %v886
        %952 = vmatprep.subr.bf16.mxu0 %v889
        %953 = vmatpush1.bf16.msra.mxu0 %v888
        %954 = vmatprep.subr.bf16.mxu0 %v891
        %955 = vmatpush1.bf16.msra.mxu0 %v890
        %956 = vmatprep.subr.bf16.mxu0 %v893
        %957 = vmatpush1.bf16.msra.mxu0 %v892
        %958 = vmatprep.subr.bf16.mxu0 %v895
        %959 = vmatpush1.bf16.msra.mxu0 %v894
        %960 = vmatprep.subr.bf16.mxu0 %v897
        %961 = vmatpush1.bf16.msra.mxu0 %v896
        %962 = vmatprep.subr.bf16.mxu0 %v899
        %963 = vmatpush1.bf16.msra.mxu0 %v898
        %964 = vmatprep.subr.bf16.mxu0 %v901
        %965 = vmatpush1.bf16.msra.mxu0 %v900
        %966 = vmatprep.subr.bf16.mxu0 %v903
        %967 = vmatpush1.bf16.msra.mxu0 %v902
        %968 = vmatprep.subr.bf16.mxu0 %v905
        %969 = vmatpush1.bf16.msra.mxu0 %v904
        %970 = vmatprep.subr.bf16.mxu0 0
        %971 = vmatpush1.bf16.msra.mxu0 0
        %972 = vmatprep.mubr.bf16.mxu0 %v938
        %973 = vmatmul.mubr.bf16.gmra.mrb[0].mxu0 %v776
        %v974 = vpop.f32.mrb[0].mxu0
        %v975 = vadd.f32 0.0, %v974
        %v976 = vpop.f32.mrb[0].mxu0
        %v977 = vadd.f32 0.0, %v976
        %v978 = vpop.f32.mrb[0].mxu0
        %v979 = vadd.f32 0.0, %v978
        %v980 = vpop.f32.mrb[0].mxu0
        %v981 = vadd.f32 0.0, %v980
        %982 = vdwg.mxu0
        %v1013 = vunpack.c.l.b16 %v702
        %v1014 = vunpack.c.h.b16 %v702
        %v1015 = vunpack.c.l.b16 %v703
        %v1016 = vunpack.c.h.b16 %v703
        %v1017 = vunpack.c.l.b16 %v704
        %v1018 = vunpack.c.h.b16 %v704
        %v1019 = vunpack.c.l.b16 %v705
        %v1020 = vunpack.c.h.b16 %v705
        %v1021 = vunpack.c.l.b16 %v706
        %v1022 = vunpack.c.h.b16 %v706
        %v1023 = vunpack.c.l.b16 %v707
        %v1024 = vunpack.c.h.b16 %v707
        %v1025 = vunpack.c.l.b16 %v708
        %v1026 = vunpack.c.h.b16 %v708
        %v1027 = vunpack.c.l.b16 %v709
        %v1028 = vunpack.c.h.b16 %v709
        %v1029 = vunpack.c.l.b16 %v710
        %v1030 = vunpack.c.h.b16 %v710
        %v1031 = vunpack.c.l.b16 %v711
        %v1032 = vunpack.c.h.b16 %v711
        %v1033 = vunpack.c.l.b16 %v712
        %v1034 = vunpack.c.h.b16 %v712
        %v1035 = vunpack.c.l.b16 %v713
        %v1036 = vunpack.c.h.b16 %v713
        %v1037 = vunpack.c.l.b16 %v714
        %v1038 = vunpack.c.h.b16 %v714
        %v1039 = vunpack.c.l.b16 %v715
        %v1040 = vunpack.c.h.b16 %v715
        %v1041 = vunpack.c.l.b16 %v716
        %v1042 = vunpack.c.h.b16 %v716
        %v1043 = vunpack.c.l.b16 %v717
        %v1044 = vunpack.c.h.b16 %v717
        %v1045 = vunpack.c.l.b16 %v718
        %v1046 = vunpack.c.h.b16 %v718
        %v1047 = vunpack.c.l.b16 %v719
        %v1048 = vunpack.c.h.b16 %v719
        %v1049 = vunpack.c.l.b16 %v720
        %v1050 = vunpack.c.h.b16 %v720
        %v1051 = vunpack.c.l.b16 %v721
        %v1052 = vunpack.c.h.b16 %v721
        %v1053 = vunpack.c.l.b16 %v722
        %v1054 = vunpack.c.h.b16 %v722
        %v1055 = vunpack.c.l.b16 %v723
        %v1056 = vunpack.c.h.b16 %v723
        %v1057 = vunpack.c.l.b16 %v724
        %v1058 = vunpack.c.h.b16 %v724
        %v1059 = vunpack.c.l.b16 %v725
        %v1060 = vunpack.c.h.b16 %v725
        %v1061 = vunpack.c.l.b16 %v726
        %v1062 = vunpack.c.h.b16 %v726
        %v1063 = vunpack.c.l.b16 %v727
        %v1064 = vunpack.c.h.b16 %v727
        %v1065 = vunpack.c.l.b16 %v728
        %v1066 = vunpack.c.h.b16 %v728
        %v1067 = vunpack.c.l.b16 %v729
        %v1068 = vunpack.c.h.b16 %v729
        %v1069 = vunpack.c.l.b16 %v730
        %v1070 = vunpack.c.h.b16 %v730
        %v1071 = vunpack.c.l.b16 %v731
        %v1072 = vunpack.c.h.b16 %v731
        %v1073 = vpack.c.b16 %v1015, %v1013
        %v1074 = vpack.c.b16 %v1016, %v1014
        %v1075 = vpack.c.b16 %v1019, %v1017
        %v1076 = vpack.c.b16 %v1020, %v1018
        %v1077 = vpack.c.b16 %v1023, %v1021
        %v1078 = vpack.c.b16 %v1024, %v1022
        %v1079 = vpack.c.b16 %v1027, %v1025
        %v1080 = vpack.c.b16 %v1028, %v1026
        %v1081 = vpack.c.b16 %v1031, %v1029
        %v1082 = vpack.c.b16 %v1032, %v1030
        %v1083 = vpack.c.b16 %v1035, %v1033
        %v1084 = vpack.c.b16 %v1036, %v1034
        %v1085 = vpack.c.b16 %v1039, %v1037
        %v1086 = vpack.c.b16 %v1040, %v1038
        %v1087 = vpack.c.b16 %v1043, %v1041
        %v1088 = vpack.c.b16 %v1044, %v1042
        %v1089 = vpack.c.b16 %v1047, %v1045
        %v1090 = vpack.c.b16 %v1048, %v1046
        %v1091 = vpack.c.b16 %v1051, %v1049
        %v1092 = vpack.c.b16 %v1052, %v1050
        %v1093 = vpack.c.b16 %v1055, %v1053
        %v1094 = vpack.c.b16 %v1056, %v1054
        %v1095 = vpack.c.b16 %v1059, %v1057
        %v1096 = vpack.c.b16 %v1060, %v1058
        %v1097 = vpack.c.b16 %v1063, %v1061
        %v1098 = vpack.c.b16 %v1064, %v1062
        %v1099 = vpack.c.b16 %v1067, %v1065
        %v1100 = vpack.c.b16 %v1068, %v1066
        %v1101 = vpack.c.b16 %v1071, %v1069
        %v1102 = vpack.c.b16 %v1072, %v1070
        %v1133 = vsel %vm936, %v701, 0
        %1135 = vmatprep.subr.bf16.mxu0 %v1074
        %1136 = vmatpush1.bf16.msra.mxu0 %v1073
        %1137 = vmatprep.subr.bf16.mxu0 %v1076
        %1138 = vmatpush1.bf16.msra.mxu0 %v1075
        %1139 = vmatprep.subr.bf16.mxu0 %v1078
        %1140 = vmatpush1.bf16.msra.mxu0 %v1077
        %1141 = vmatprep.subr.bf16.mxu0 %v1080
        %1142 = vmatpush1.bf16.msra.mxu0 %v1079
        %1143 = vmatprep.subr.bf16.mxu0 %v1082
        %1144 = vmatpush1.bf16.msra.mxu0 %v1081
        %1145 = vmatprep.subr.bf16.mxu0 %v1084
        %1146 = vmatpush1.bf16.msra.mxu0 %v1083
        %1147 = vmatprep.subr.bf16.mxu0 %v1086
        %1148 = vmatpush1.bf16.msra.mxu0 %v1085
        %1149 = vmatprep.subr.bf16.mxu0 %v1088
        %1150 = vmatpush1.bf16.msra.mxu0 %v1087
        %1151 = vmatprep.subr.bf16.mxu0 %v1090
        %1152 = vmatpush1.bf16.msra.mxu0 %v1089
        %1153 = vmatprep.subr.bf16.mxu0 %v1092
        %1154 = vmatpush1.bf16.msra.mxu0 %v1091
        %1155 = vmatprep.subr.bf16.mxu0 %v1094
        %1156 = vmatpush1.bf16.msra.mxu0 %v1093
        %1157 = vmatprep.subr.bf16.mxu0 %v1096
        %1158 = vmatpush1.bf16.msra.mxu0 %v1095
        %1159 = vmatprep.subr.bf16.mxu0 %v1098
        %1160 = vmatpush1.bf16.msra.mxu0 %v1097
        %1161 = vmatprep.subr.bf16.mxu0 %v1100
        %1162 = vmatpush1.bf16.msra.mxu0 %v1099
        %1163 = vmatprep.subr.bf16.mxu0 %v1102
        %1164 = vmatpush1.bf16.msra.mxu0 %v1101
        %1165 = vmatprep.subr.bf16.mxu0 0
        %1166 = vmatpush1.bf16.msra.mxu0 0
        %1167 = vmatprep.mubr.bf16.mxu0 %v1133
        %1168 = vmatmul.mubr.bf16.gmra.mrb[0].mxu0 %v700
        %v1169 = vpop.f32.mrb[0].mxu0
        %v1170 = vadd.f32 %v975, %v1169
        %v1171 = vpop.f32.mrb[0].mxu0
        %v1172 = vadd.f32 %v977, %v1171
        %v1173 = vpop.f32.mrb[0].mxu0
        %v1174 = vadd.f32 %v979, %v1173
        %v1175 = vpop.f32.mrb[0].mxu0
        %v1176 = vadd.f32 %v981, %v1175
        %1177 = vdwg.mxu0
        %s1178 = scalar_lea.vmem %s3, 480
        %v1179 = vld [vmem:[%s1178] sm:$0xff]
        %v1180 = vld [vmem:[%s1178 + $0x8] sm:$0xff]
        %v1181 = vld [vmem:[%s1178 + $0x10] sm:$0xff]
        %v1182 = vld [vmem:[%s1178 + $0x18] sm:$0xff]
        %v1183 = vld [vmem:[%s1178 + $0x20] sm:$0xff]
        %v1184 = vld [vmem:[%s1178 + $0x28] sm:$0xff]
        %v1185 = vld [vmem:[%s1178 + $0x30] sm:$0xff]
        %v1186 = vld [vmem:[%s1178 + $0x38] sm:$0xff]
        %v1187 = vld [vmem:[%s1178 + $0x40] sm:$0xff]
        %v1188 = vld [vmem:[%s1178 + $0x48] sm:$0xff]
        %v1189 = vld [vmem:[%s1178 + $0x50] sm:$0xff]
        %v1190 = vld [vmem:[%s1178 + $0x58] sm:$0xff]
        %v1191 = vld [vmem:[%s1178 + $0x60] sm:$0xff]
        %v1192 = vld [vmem:[%s1178 + $0x68] sm:$0xff]
        %v1193 = vld [vmem:[%s1178 + $0x70] sm:$0xff]
        %v1194 = vld [vmem:[%s1178 + $0x78] sm:$0xff]
        %v1195 = vld [vmem:[%s1178 + $0x80] sm:$0xff]
        %v1196 = vld [vmem:[%s1178 + $0x88] sm:$0xff]
        %v1197 = vld [vmem:[%s1178 + $0x90] sm:$0xff]
        %v1198 = vld [vmem:[%s1178 + $0x98] sm:$0xff]
        %v1199 = vld [vmem:[%s1178 + $0xa0] sm:$0xff]
        %v1200 = vld [vmem:[%s1178 + $0xa8] sm:$0xff]
        %v1201 = vld [vmem:[%s1178 + $0xb0] sm:$0xff]
        %v1202 = vld [vmem:[%s1178 + $0xb8] sm:$0xff]
        %v1203 = vld [vmem:[%s1178 + $0xc0] sm:$0xff]
        %v1204 = vld [vmem:[%s1178 + $0xc8] sm:$0xff]
        %v1205 = vld [vmem:[%s1178 + $0xd0] sm:$0xff]
        %v1206 = vld [vmem:[%s1178 + $0xd8] sm:$0xff]
        %v1207 = vld [vmem:[%s1178 + $0xe0] sm:$0xff]
        %v1208 = vld [vmem:[%s1178 + $0xe8] sm:$0xff]
        %vm1212 = vcmask 1046528
        %v1213 = vrot.slane %v700, 1
        %v1214 = vrot.slane %v732, 1
        %v1215 = vsel %vm1212, %v1213, %v1214
        %v1216 = vrot.slane %v701, 1
        %v1217 = vsel %vm1212, %v1216, %v1214
        %v1249 = vunpack.c.l.b16 %v1179
        %v1250 = vunpack.c.h.b16 %v1179
        %v1251 = vunpack.c.l.b16 %v1180
        %v1252 = vunpack.c.h.b16 %v1180
        %v1253 = vunpack.c.l.b16 %v1181
        %v1254 = vunpack.c.h.b16 %v1181
        %v1255 = vunpack.c.l.b16 %v1182
        %v1256 = vunpack.c.h.b16 %v1182
        %v1257 = vunpack.c.l.b16 %v1183
        %v1258 = vunpack.c.h.b16 %v1183
        %v1259 = vunpack.c.l.b16 %v1184
        %v1260 = vunpack.c.h.b16 %v1184
        %v1261 = vunpack.c.l.b16 %v1185
        %v1262 = vunpack.c.h.b16 %v1185
        %v1263 = vunpack.c.l.b16 %v1186
        %v1264 = vunpack.c.h.b16 %v1186
        %v1265 = vunpack.c.l.b16 %v1187
        %v1266 = vunpack.c.h.b16 %v1187
        %v1267 = vunpack.c.l.b16 %v1188
        %v1268 = vunpack.c.h.b16 %v1188
        %v1269 = vunpack.c.l.b16 %v1189
        %v1270 = vunpack.c.h.b16 %v1189
        %v1271 = vunpack.c.l.b16 %v1190
        %v1272 = vunpack.c.h.b16 %v1190
        %v1273 = vunpack.c.l.b16 %v1191
        %v1274 = vunpack.c.h.b16 %v1191
        %v1275 = vunpack.c.l.b16 %v1192
        %v1276 = vunpack.c.h.b16 %v1192
        %v1277 = vunpack.c.l.b16 %v1193
        %v1278 = vunpack.c.h.b16 %v1193
        %v1279 = vunpack.c.l.b16 %v1194
        %v1280 = vunpack.c.h.b16 %v1194
        %v1281 = vunpack.c.l.b16 %v1195
        %v1282 = vunpack.c.h.b16 %v1195
        %v1283 = vunpack.c.l.b16 %v1196
        %v1284 = vunpack.c.h.b16 %v1196
        %v1285 = vunpack.c.l.b16 %v1197
        %v1286 = vunpack.c.h.b16 %v1197
        %v1287 = vunpack.c.l.b16 %v1198
        %v1288 = vunpack.c.h.b16 %v1198
        %v1289 = vunpack.c.l.b16 %v1199
        %v1290 = vunpack.c.h.b16 %v1199
        %v1291 = vunpack.c.l.b16 %v1200
        %v1292 = vunpack.c.h.b16 %v1200
        %v1293 = vunpack.c.l.b16 %v1201
        %v1294 = vunpack.c.h.b16 %v1201
        %v1295 = vunpack.c.l.b16 %v1202
        %v1296 = vunpack.c.h.b16 %v1202
        %v1297 = vunpack.c.l.b16 %v1203
        %v1298 = vunpack.c.h.b16 %v1203
        %v1299 = vunpack.c.l.b16 %v1204
        %v1300 = vunpack.c.h.b16 %v1204
        %v1301 = vunpack.c.l.b16 %v1205
        %v1302 = vunpack.c.h.b16 %v1205
        %v1303 = vunpack.c.l.b16 %v1206
        %v1304 = vunpack.c.h.b16 %v1206
        %v1305 = vunpack.c.l.b16 %v1207
        %v1306 = vunpack.c.h.b16 %v1207
        %v1307 = vunpack.c.l.b16 %v1208
        %v1308 = vunpack.c.h.b16 %v1208
        %v1309 = vpack.c.b16 %v1251, %v1249
        %v1310 = vpack.c.b16 %v1252, %v1250
        %v1311 = vpack.c.b16 %v1255, %v1253
        %v1312 = vpack.c.b16 %v1256, %v1254
        %v1313 = vpack.c.b16 %v1259, %v1257
        %v1314 = vpack.c.b16 %v1260, %v1258
        %v1315 = vpack.c.b16 %v1263, %v1261
        %v1316 = vpack.c.b16 %v1264, %v1262
        %v1317 = vpack.c.b16 %v1267, %v1265
        %v1318 = vpack.c.b16 %v1268, %v1266
        %v1319 = vpack.c.b16 %v1271, %v1269
        %v1320 = vpack.c.b16 %v1272, %v1270
        %v1321 = vpack.c.b16 %v1275, %v1273
        %v1322 = vpack.c.b16 %v1276, %v1274
        %v1323 = vpack.c.b16 %v1279, %v1277
        %v1324 = vpack.c.b16 %v1280, %v1278
        %v1325 = vpack.c.b16 %v1283, %v1281
        %v1326 = vpack.c.b16 %v1284, %v1282
        %v1327 = vpack.c.b16 %v1287, %v1285
        %v1328 = vpack.c.b16 %v1288, %v1286
        %v1329 = vpack.c.b16 %v1291, %v1289
        %v1330 = vpack.c.b16 %v1292, %v1290
        %v1331 = vpack.c.b16 %v1295, %v1293
        %v1332 = vpack.c.b16 %v1296, %v1294
        %v1333 = vpack.c.b16 %v1299, %v1297
        %v1334 = vpack.c.b16 %v1300, %v1298
        %v1335 = vpack.c.b16 %v1303, %v1301
        %v1336 = vpack.c.b16 %v1304, %v1302
        %v1337 = vpack.c.b16 %v1307, %v1305
        %v1338 = vpack.c.b16 %v1308, %v1306
        %v1370 = vsel %vm936, %v1217, 0
        %1372 = vmatprep.subr.bf16.mxu0 %v1310
        %1373 = vmatpush1.bf16.msra.mxu0 %v1309
        %1374 = vmatprep.subr.bf16.mxu0 %v1312
        %1375 = vmatpush1.bf16.msra.mxu0 %v1311
        %1376 = vmatprep.subr.bf16.mxu0 %v1314
        %1377 = vmatpush1.bf16.msra.mxu0 %v1313
        %1378 = vmatprep.subr.bf16.mxu0 %v1316
        %1379 = vmatpush1.bf16.msra.mxu0 %v1315
        %1380 = vmatprep.subr.bf16.mxu0 %v1318
        %1381 = vmatpush1.bf16.msra.mxu0 %v1317
        %1382 = vmatprep.subr.bf16.mxu0 %v1320
        %1383 = vmatpush1.bf16.msra.mxu0 %v1319
        %1384 = vmatprep.subr.bf16.mxu0 %v1322
        %1385 = vmatpush1.bf16.msra.mxu0 %v1321
        %1386 = vmatprep.subr.bf16.mxu0 %v1324
        %1387 = vmatpush1.bf16.msra.mxu0 %v1323
        %1388 = vmatprep.subr.bf16.mxu0 %v1326
        %1389 = vmatpush1.bf16.msra.mxu0 %v1325
        %1390 = vmatprep.subr.bf16.mxu0 %v1328
        %1391 = vmatpush1.bf16.msra.mxu0 %v1327
        %1392 = vmatprep.subr.bf16.mxu0 %v1330
        %1393 = vmatpush1.bf16.msra.mxu0 %v1329
        %1394 = vmatprep.subr.bf16.mxu0 %v1332
        %1395 = vmatpush1.bf16.msra.mxu0 %v1331
        %1396 = vmatprep.subr.bf16.mxu0 %v1334
        %1397 = vmatpush1.bf16.msra.mxu0 %v1333
        %1398 = vmatprep.subr.bf16.mxu0 %v1336
        %1399 = vmatpush1.bf16.msra.mxu0 %v1335
        %1400 = vmatprep.subr.bf16.mxu0 %v1338
        %1401 = vmatpush1.bf16.msra.mxu0 %v1337
        %1402 = vmatprep.subr.bf16.mxu0 0
        %1403 = vmatpush1.bf16.msra.mxu0 0
        %1404 = vmatprep.mubr.bf16.mxu0 %v1370
        %1405 = vmatmul.mubr.bf16.gmra.mrb[0].mxu0 %v1215
        %v1406 = vpop.f32.mrb[0].mxu0
        %v1407 = vadd.f32 0.0, %v1406
        %v1408 = vpop.f32.mrb[0].mxu0
        %v1409 = vadd.f32 0.0, %v1408
        %v1410 = vpop.f32.mrb[0].mxu0
        %v1411 = vadd.f32 0.0, %v1410
        %v1412 = vpop.f32.mrb[0].mxu0
        %v1413 = vadd.f32 0.0, %v1412
        %1414 = vdwg.mxu0
        %v1415 = vadd.f32 %v1170, %v1407
        %v1416 = vadd.f32 %v1172, %v1409
        %v1417 = vadd.f32 %v1174, %v1411
        %v1418 = vadd.f32 %v1176, %v1413
        %v1419 = vld [vmem:[%s4] sm:$0x3]
        %v1421 = vlaneseq
        %v1422 = vshrl.u32 %v1421, 7
        %v1423 = vsub.s32 0, %v1422
        %v1424 = vrot.slane %v1419, %v1423
        %v1425 = vlaneseq
        %v1426 = vshrl.u32 %v1425, 7
        %v1427 = vsub.s32 1, %v1426
        %v1428 = vrot.slane %v1419, %v1427
        %v1431 = vmul.f32 %v1415, %v1424
        %v1432 = vmul.f32 %v1416, %v1428
        %v1433 = vmul.f32 %v1417, %v1424
        %v1434 = vmul.f32 %v1418, %v1428
        %v1435 = vld [vmem:[%s5] sm:$0x3]
        %v1437 = vlaneseq
        %v1438 = vshrl.u32 %v1437, 7
        %v1439 = vsub.s32 0, %v1438
        %v1440 = vrot.slane %v1435, %v1439
        %v1441 = vlaneseq
        %v1442 = vshrl.u32 %v1441, 7
        %v1443 = vsub.s32 1, %v1442
        %v1444 = vrot.slane %v1435, %v1443
        %v1447 = vadd.f32 %v1431, %v1440
        %v1448 = vadd.f32 %v1432, %v1444
        %v1449 = vadd.f32 %v1433, %v1440
        %v1450 = vadd.f32 %v1434, %v1444
        %v1451 = vmax.f32 %v1447, 0.0
        %v1452 = vmax.f32 %v1448, 0.0
        %v1453 = vmax.f32 %v1449, 0.0
        %v1454 = vmax.f32 %v1450, 0.0
        %v1455 = vpack.c.bf16 %v1453, %v1451
        %v1456 = vpack.c.bf16 %v1454, %v1452
        %v1457 = vld [vmem:[%s6] sm:$0xff]
        %v1458 = vld [vmem:[%s6 + $0x8] sm:$0xff]
        %v1459 = vld [vmem:[%s6 + $0x10] sm:$0xff]
        %v1460 = vld [vmem:[%s6 + $0x18] sm:$0xff]
        %v1461 = vld [vmem:[%s6 + $0x20] sm:$0xff]
        %v1462 = vld [vmem:[%s6 + $0x28] sm:$0xff]
        %v1463 = vld [vmem:[%s6 + $0x30] sm:$0xff]
        %v1464 = vld [vmem:[%s6 + $0x38] sm:$0xff]
        %v1465 = vld [vmem:[%s6 + $0x40] sm:$0xff]
        %v1466 = vld [vmem:[%s6 + $0x48] sm:$0xff]
        %v1467 = vld [vmem:[%s6 + $0x50] sm:$0xff]
        %v1468 = vld [vmem:[%s6 + $0x58] sm:$0xff]
        %v1469 = vld [vmem:[%s6 + $0x60] sm:$0xff]
        %v1470 = vld [vmem:[%s6 + $0x68] sm:$0xff]
        %v1471 = vld [vmem:[%s6 + $0x70] sm:$0xff]
        %v1472 = vld [vmem:[%s6 + $0x78] sm:$0xff]
        %v1473 = vld [vmem:[%s6 + $0x80] sm:$0xff]
        %v1474 = vld [vmem:[%s6 + $0x88] sm:$0xff]
        %v1475 = vld [vmem:[%s6 + $0x90] sm:$0xff]
        %v1476 = vld [vmem:[%s6 + $0x98] sm:$0xff]
        %v1477 = vld [vmem:[%s6 + $0xa0] sm:$0xff]
        %v1478 = vld [vmem:[%s6 + $0xa8] sm:$0xff]
        %v1479 = vld [vmem:[%s6 + $0xb0] sm:$0xff]
        %v1480 = vld [vmem:[%s6 + $0xb8] sm:$0xff]
        %v1481 = vld [vmem:[%s6 + $0xc0] sm:$0xff]
        %v1482 = vld [vmem:[%s6 + $0xc8] sm:$0xff]
        %v1483 = vld [vmem:[%s6 + $0xd0] sm:$0xff]
        %v1484 = vld [vmem:[%s6 + $0xd8] sm:$0xff]
        %v1485 = vld [vmem:[%s6 + $0xe0] sm:$0xff]
        %v1486 = vld [vmem:[%s6 + $0xe8] sm:$0xff]
        %v1487 = vld [vmem:[%s6 + $0xf0] sm:$0xff]
        %v1488 = vld [vmem:[%s6 + $0xf8] sm:$0xff]
        %v1489 = vld [vmem:[%s6 + $0x100] sm:$0xff]
        %v1490 = vld [vmem:[%s6 + $0x108] sm:$0xff]
        %v1491 = vld [vmem:[%s6 + $0x110] sm:$0xff]
        %v1492 = vld [vmem:[%s6 + $0x118] sm:$0xff]
        %v1493 = vld [vmem:[%s6 + $0x120] sm:$0xff]
        %v1494 = vld [vmem:[%s6 + $0x128] sm:$0xff]
        %v1495 = vld [vmem:[%s6 + $0x130] sm:$0xff]
        %v1496 = vld [vmem:[%s6 + $0x138] sm:$0xff]
        %v1497 = vld [vmem:[%s6 + $0x140] sm:$0xff]
        %v1498 = vld [vmem:[%s6 + $0x148] sm:$0xff]
        %v1499 = vld [vmem:[%s6 + $0x150] sm:$0xff]
        %v1500 = vld [vmem:[%s6 + $0x158] sm:$0xff]
        %v1501 = vld [vmem:[%s6 + $0x160] sm:$0xff]
        %v1502 = vld [vmem:[%s6 + $0x168] sm:$0xff]
        %v1503 = vld [vmem:[%s6 + $0x170] sm:$0xff]
        %v1504 = vld [vmem:[%s6 + $0x178] sm:$0xff]
        %v1505 = vld [vmem:[%s6 + $0x180] sm:$0xff]
        %v1506 = vld [vmem:[%s6 + $0x188] sm:$0xff]
        %v1507 = vld [vmem:[%s6 + $0x190] sm:$0xff]
        %v1508 = vld [vmem:[%s6 + $0x198] sm:$0xff]
        %v1509 = vld [vmem:[%s6 + $0x1a0] sm:$0xff]
        %v1510 = vld [vmem:[%s6 + $0x1a8] sm:$0xff]
        %v1511 = vld [vmem:[%s6 + $0x1b0] sm:$0xff]
        %v1512 = vld [vmem:[%s6 + $0x1b8] sm:$0xff]
        %v1513 = vld [vmem:[%s6 + $0x1c0] sm:$0xff]
        %v1514 = vld [vmem:[%s6 + $0x1c8] sm:$0xff]
        %v1515 = vld [vmem:[%s6 + $0x1d0] sm:$0xff]
        %v1516 = vld [vmem:[%s6 + $0x1d8] sm:$0xff]
        %v1517 = vld [vmem:[%s6 + $0x1e0] sm:$0xff]
        %v1518 = vld [vmem:[%s6 + $0x1e8] sm:$0xff]
        %v1519 = vld [vmem:[%s6 + $0x1f0] sm:$0xff]
        %v1520 = vld [vmem:[%s6 + $0x1f8] sm:$0xff]
        %v1521 = vld [vmem:[%s6 + $0x200] sm:$0xff]
        %v1522 = vld [vmem:[%s6 + $0x208] sm:$0xff]
        %v1523 = vld [vmem:[%s6 + $0x210] sm:$0xff]
        %v1524 = vld [vmem:[%s6 + $0x218] sm:$0xff]
        %v1525 = vld [vmem:[%s6 + $0x220] sm:$0xff]
        %v1526 = vld [vmem:[%s6 + $0x228] sm:$0xff]
        %v1527 = vld [vmem:[%s6 + $0x230] sm:$0xff]
        %v1528 = vld [vmem:[%s6 + $0x238] sm:$0xff]
        %v1529 = vld [vmem:[%s6 + $0x240] sm:$0xff]
        %v1530 = vld [vmem:[%s6 + $0x248] sm:$0xff]
        %v1531 = vld [vmem:[%s6 + $0x250] sm:$0xff]
        %v1532 = vld [vmem:[%s6 + $0x258] sm:$0xff]
        %v1533 = vld [vmem:[%s6 + $0x260] sm:$0xff]
        %v1534 = vld [vmem:[%s6 + $0x268] sm:$0xff]
        %v1535 = vld [vmem:[%s6 + $0x270] sm:$0xff]
        %v1536 = vld [vmem:[%s6 + $0x278] sm:$0xff]
        %v1537 = vld [vmem:[%s6 + $0x280] sm:$0xff]
        %v1538 = vld [vmem:[%s6 + $0x288] sm:$0xff]
        %v1539 = vld [vmem:[%s6 + $0x290] sm:$0xff]
        %v1540 = vld [vmem:[%s6 + $0x298] sm:$0xff]
        %v1541 = vld [vmem:[%s6 + $0x2a0] sm:$0xff]
        %v1542 = vld [vmem:[%s6 + $0x2a8] sm:$0xff]
        %v1543 = vld [vmem:[%s6 + $0x2b0] sm:$0xff]
        %v1544 = vld [vmem:[%s6 + $0x2b8] sm:$0xff]
        %v1545 = vld [vmem:[%s6 + $0x2c0] sm:$0xff]
        %v1546 = vld [vmem:[%s6 + $0x2c8] sm:$0xff]
        %v1547 = vld [vmem:[%s6 + $0x2d0] sm:$0xff]
        %v1548 = vld [vmem:[%s6 + $0x2d8] sm:$0xff]
        %v1549 = vld [vmem:[%s6 + $0x2e0] sm:$0xff]
        %v1550 = vld [vmem:[%s6 + $0x2e8] sm:$0xff]
        %v1551 = vld [vmem:[%s6 + $0x2f0] sm:$0xff]
        %v1552 = vld [vmem:[%s6 + $0x2f8] sm:$0xff]
        %v1553 = vld [vmem:[%s6 + $0x300] sm:$0xff]
        %v1554 = vld [vmem:[%s6 + $0x308] sm:$0xff]
        %v1555 = vld [vmem:[%s6 + $0x310] sm:$0xff]
        %v1556 = vld [vmem:[%s6 + $0x318] sm:$0xff]
        %v1557 = vld [vmem:[%s6 + $0x320] sm:$0xff]
        %v1558 = vld [vmem:[%s6 + $0x328] sm:$0xff]
        %v1559 = vld [vmem:[%s6 + $0x330] sm:$0xff]
        %v1560 = vld [vmem:[%s6 + $0x338] sm:$0xff]
        %v1561 = vld [vmem:[%s6 + $0x340] sm:$0xff]
        %v1562 = vld [vmem:[%s6 + $0x348] sm:$0xff]
        %v1563 = vld [vmem:[%s6 + $0x350] sm:$0xff]
        %v1564 = vld [vmem:[%s6 + $0x358] sm:$0xff]
        %v1673 = vunpack.c.l.b16 %v1457
        %v1674 = vunpack.c.h.b16 %v1457
        %v1675 = vunpack.c.l.b16 %v1458
        %v1676 = vunpack.c.h.b16 %v1458
        %v1677 = vunpack.c.l.b16 %v1459
        %v1678 = vunpack.c.h.b16 %v1459
        %v1679 = vunpack.c.l.b16 %v1460
        %v1680 = vunpack.c.h.b16 %v1460
        %v1681 = vunpack.c.l.b16 %v1461
        %v1682 = vunpack.c.h.b16 %v1461
        %v1683 = vunpack.c.l.b16 %v1462
        %v1684 = vunpack.c.h.b16 %v1462
        %v1685 = vunpack.c.l.b16 %v1463
        %v1686 = vunpack.c.h.b16 %v1463
        %v1687 = vunpack.c.l.b16 %v1464
        %v1688 = vunpack.c.h.b16 %v1464
        %v1689 = vunpack.c.l.b16 %v1465
        %v1690 = vunpack.c.h.b16 %v1465
        %v1691 = vunpack.c.l.b16 %v1466
        %v1692 = vunpack.c.h.b16 %v1466
        %v1693 = vunpack.c.l.b16 %v1467
        %v1694 = vunpack.c.h.b16 %v1467
        %v1695 = vunpack.c.l.b16 %v1468
        %v1696 = vunpack.c.h.b16 %v1468
        %v1697 = vunpack.c.l.b16 %v1469
        %v1698 = vunpack.c.h.b16 %v1469
        %v1699 = vunpack.c.l.b16 %v1470
        %v1700 = vunpack.c.h.b16 %v1470
        %v1701 = vunpack.c.l.b16 %v1471
        %v1702 = vunpack.c.h.b16 %v1471
        %v1703 = vunpack.c.l.b16 %v1472
        %v1704 = vunpack.c.h.b16 %v1472
        %v1705 = vunpack.c.l.b16 %v1473
        %v1706 = vunpack.c.h.b16 %v1473
        %v1707 = vunpack.c.l.b16 %v1474
        %v1708 = vunpack.c.h.b16 %v1474
        %v1709 = vunpack.c.l.b16 %v1475
        %v1710 = vunpack.c.h.b16 %v1475
        %v1711 = vunpack.c.l.b16 %v1476
        %v1712 = vunpack.c.h.b16 %v1476
        %v1713 = vunpack.c.l.b16 %v1477
        %v1714 = vunpack.c.h.b16 %v1477
        %v1715 = vunpack.c.l.b16 %v1478
        %v1716 = vunpack.c.h.b16 %v1478
        %v1717 = vunpack.c.l.b16 %v1479
        %v1718 = vunpack.c.h.b16 %v1479
        %v1719 = vunpack.c.l.b16 %v1480
        %v1720 = vunpack.c.h.b16 %v1480
        %v1721 = vunpack.c.l.b16 %v1481
        %v1722 = vunpack.c.h.b16 %v1481
        %v1723 = vunpack.c.l.b16 %v1482
        %v1724 = vunpack.c.h.b16 %v1482
        %v1725 = vunpack.c.l.b16 %v1483
        %v1726 = vunpack.c.h.b16 %v1483
        %v1727 = vunpack.c.l.b16 %v1484
        %v1728 = vunpack.c.h.b16 %v1484
        %v1729 = vunpack.c.l.b16 %v1485
        %v1730 = vunpack.c.h.b16 %v1485
        %v1731 = vunpack.c.l.b16 %v1486
        %v1732 = vunpack.c.h.b16 %v1486
        %v1733 = vunpack.c.l.b16 %v1487
        %v1734 = vunpack.c.h.b16 %v1487
        %v1735 = vunpack.c.l.b16 %v1488
        %v1736 = vunpack.c.h.b16 %v1488
        %v1737 = vunpack.c.l.b16 %v1489
        %v1738 = vunpack.c.h.b16 %v1489
        %v1739 = vunpack.c.l.b16 %v1490
        %v1740 = vunpack.c.h.b16 %v1490
        %v1741 = vunpack.c.l.b16 %v1491
        %v1742 = vunpack.c.h.b16 %v1491
        %v1743 = vunpack.c.l.b16 %v1492
        %v1744 = vunpack.c.h.b16 %v1492
        %v1745 = vunpack.c.l.b16 %v1493
        %v1746 = vunpack.c.h.b16 %v1493
        %v1747 = vunpack.c.l.b16 %v1494
        %v1748 = vunpack.c.h.b16 %v1494
        %v1749 = vunpack.c.l.b16 %v1495
        %v1750 = vunpack.c.h.b16 %v1495
        %v1751 = vunpack.c.l.b16 %v1496
        %v1752 = vunpack.c.h.b16 %v1496
        %v1753 = vunpack.c.l.b16 %v1497
        %v1754 = vunpack.c.h.b16 %v1497
        %v1755 = vunpack.c.l.b16 %v1498
        %v1756 = vunpack.c.h.b16 %v1498
        %v1757 = vunpack.c.l.b16 %v1499
        %v1758 = vunpack.c.h.b16 %v1499
        %v1759 = vunpack.c.l.b16 %v1500
        %v1760 = vunpack.c.h.b16 %v1500
        %v1761 = vunpack.c.l.b16 %v1501
        %v1762 = vunpack.c.h.b16 %v1501
        %v1763 = vunpack.c.l.b16 %v1502
        %v1764 = vunpack.c.h.b16 %v1502
        %v1765 = vunpack.c.l.b16 %v1503
        %v1766 = vunpack.c.h.b16 %v1503
        %v1767 = vunpack.c.l.b16 %v1504
        %v1768 = vunpack.c.h.b16 %v1504
        %v1769 = vunpack.c.l.b16 %v1505
        %v1770 = vunpack.c.h.b16 %v1505
        %v1771 = vunpack.c.l.b16 %v1506
        %v1772 = vunpack.c.h.b16 %v1506
        %v1773 = vunpack.c.l.b16 %v1507
        %v1774 = vunpack.c.h.b16 %v1507
        %v1775 = vunpack.c.l.b16 %v1508
        %v1776 = vunpack.c.h.b16 %v1508
        %v1777 = vunpack.c.l.b16 %v1509
        %v1778 = vunpack.c.h.b16 %v1509
        %v1779 = vunpack.c.l.b16 %v1510
        %v1780 = vunpack.c.h.b16 %v1510
        %v1781 = vunpack.c.l.b16 %v1511
        %v1782 = vunpack.c.h.b16 %v1511
        %v1783 = vunpack.c.l.b16 %v1512
        %v1784 = vunpack.c.h.b16 %v1512
        %v1785 = vunpack.c.l.b16 %v1513
        %v1786 = vunpack.c.h.b16 %v1513
        %v1787 = vunpack.c.l.b16 %v1514
        %v1788 = vunpack.c.h.b16 %v1514
        %v1789 = vunpack.c.l.b16 %v1515
        %v1790 = vunpack.c.h.b16 %v1515
        %v1791 = vunpack.c.l.b16 %v1516
        %v1792 = vunpack.c.h.b16 %v1516
        %v1793 = vunpack.c.l.b16 %v1517
        %v1794 = vunpack.c.h.b16 %v1517
        %v1795 = vunpack.c.l.b16 %v1518
        %v1796 = vunpack.c.h.b16 %v1518
        %v1797 = vunpack.c.l.b16 %v1519
        %v1798 = vunpack.c.h.b16 %v1519
        %v1799 = vunpack.c.l.b16 %v1520
        %v1800 = vunpack.c.h.b16 %v1520
        %v1801 = vunpack.c.l.b16 %v1521
        %v1802 = vunpack.c.h.b16 %v1521
        %v1803 = vunpack.c.l.b16 %v1522
        %v1804 = vunpack.c.h.b16 %v1522
        %v1805 = vunpack.c.l.b16 %v1523
        %v1806 = vunpack.c.h.b16 %v1523
        %v1807 = vunpack.c.l.b16 %v1524
        %v1808 = vunpack.c.h.b16 %v1524
        %v1809 = vunpack.c.l.b16 %v1525
        %v1810 = vunpack.c.h.b16 %v1525
        %v1811 = vunpack.c.l.b16 %v1526
        %v1812 = vunpack.c.h.b16 %v1526
        %v1813 = vunpack.c.l.b16 %v1527
        %v1814 = vunpack.c.h.b16 %v1527
        %v1815 = vunpack.c.l.b16 %v1528
        %v1816 = vunpack.c.h.b16 %v1528
        %v1817 = vunpack.c.l.b16 %v1529
        %v1818 = vunpack.c.h.b16 %v1529
        %v1819 = vunpack.c.l.b16 %v1530
        %v1820 = vunpack.c.h.b16 %v1530
        %v1821 = vunpack.c.l.b16 %v1531
        %v1822 = vunpack.c.h.b16 %v1531
        %v1823 = vunpack.c.l.b16 %v1532
        %v1824 = vunpack.c.h.b16 %v1532
        %v1825 = vunpack.c.l.b16 %v1533
        %v1826 = vunpack.c.h.b16 %v1533
        %v1827 = vunpack.c.l.b16 %v1534
        %v1828 = vunpack.c.h.b16 %v1534
        %v1829 = vunpack.c.l.b16 %v1535
        %v1830 = vunpack.c.h.b16 %v1535
        %v1831 = vunpack.c.l.b16 %v1536
        %v1832 = vunpack.c.h.b16 %v1536
        %v1833 = vunpack.c.l.b16 %v1537
        %v1834 = vunpack.c.h.b16 %v1537
        %v1835 = vunpack.c.l.b16 %v1538
        %v1836 = vunpack.c.h.b16 %v1538
        %v1837 = vunpack.c.l.b16 %v1539
        %v1838 = vunpack.c.h.b16 %v1539
        %v1839 = vunpack.c.l.b16 %v1540
        %v1840 = vunpack.c.h.b16 %v1540
        %v1841 = vunpack.c.l.b16 %v1541
        %v1842 = vunpack.c.h.b16 %v1541
        %v1843 = vunpack.c.l.b16 %v1542
        %v1844 = vunpack.c.h.b16 %v1542
        %v1845 = vunpack.c.l.b16 %v1543
        %v1846 = vunpack.c.h.b16 %v1543
        %v1847 = vunpack.c.l.b16 %v1544
        %v1848 = vunpack.c.h.b16 %v1544
        %v1849 = vunpack.c.l.b16 %v1545
        %v1850 = vunpack.c.h.b16 %v1545
        %v1851 = vunpack.c.l.b16 %v1546
        %v1852 = vunpack.c.h.b16 %v1546
        %v1853 = vunpack.c.l.b16 %v1547
        %v1854 = vunpack.c.h.b16 %v1547
        %v1855 = vunpack.c.l.b16 %v1548
        %v1856 = vunpack.c.h.b16 %v1548
        %v1857 = vunpack.c.l.b16 %v1549
        %v1858 = vunpack.c.h.b16 %v1549
        %v1859 = vunpack.c.l.b16 %v1550
        %v1860 = vunpack.c.h.b16 %v1550
        %v1861 = vunpack.c.l.b16 %v1551
        %v1862 = vunpack.c.h.b16 %v1551
        %v1863 = vunpack.c.l.b16 %v1552
        %v1864 = vunpack.c.h.b16 %v1552
        %v1865 = vunpack.c.l.b16 %v1553
        %v1866 = vunpack.c.h.b16 %v1553
        %v1867 = vunpack.c.l.b16 %v1554
        %v1868 = vunpack.c.h.b16 %v1554
        %v1869 = vunpack.c.l.b16 %v1555
        %v1870 = vunpack.c.h.b16 %v1555
        %v1871 = vunpack.c.l.b16 %v1556
        %v1872 = vunpack.c.h.b16 %v1556
        %v1873 = vunpack.c.l.b16 %v1557
        %v1874 = vunpack.c.h.b16 %v1557
        %v1875 = vunpack.c.l.b16 %v1558
        %v1876 = vunpack.c.h.b16 %v1558
        %v1877 = vunpack.c.l.b16 %v1559
        %v1878 = vunpack.c.h.b16 %v1559
        %v1879 = vunpack.c.l.b16 %v1560
        %v1880 = vunpack.c.h.b16 %v1560
        %v1881 = vunpack.c.l.b16 %v1561
        %v1882 = vunpack.c.h.b16 %v1561
        %v1883 = vunpack.c.l.b16 %v1562
        %v1884 = vunpack.c.h.b16 %v1562
        %v1885 = vunpack.c.l.b16 %v1563
        %v1886 = vunpack.c.h.b16 %v1563
        %v1887 = vunpack.c.l.b16 %v1564
        %v1888 = vunpack.c.h.b16 %v1564
        %v1889 = vpack.c.b16 %v1681, %v1673
        %v1890 = vpack.c.b16 %v1682, %v1674
        %v1891 = vpack.c.b16 %v1683, %v1675
        %v1892 = vpack.c.b16 %v1684, %v1676
        %v1893 = vpack.c.b16 %v1685, %v1677
        %v1894 = vpack.c.b16 %v1686, %v1678
        %v1895 = vpack.c.b16 %v1687, %v1679
        %v1896 = vpack.c.b16 %v1688, %v1680
        %v1897 = vpack.c.b16 %v1697, %v1689
        %v1898 = vpack.c.b16 %v1698, %v1690
        %v1899 = vpack.c.b16 %v1699, %v1691
        %v1900 = vpack.c.b16 %v1700, %v1692
        %v1901 = vpack.c.b16 %v1701, %v1693
        %v1902 = vpack.c.b16 %v1702, %v1694
        %v1903 = vpack.c.b16 %v1703, %v1695
        %v1904 = vpack.c.b16 %v1704, %v1696
        %v1905 = vpack.c.b16 %v1713, %v1705
        %v1906 = vpack.c.b16 %v1714, %v1706
        %v1907 = vpack.c.b16 %v1715, %v1707
        %v1908 = vpack.c.b16 %v1716, %v1708
        %v1909 = vpack.c.b16 %v1717, %v1709
        %v1910 = vpack.c.b16 %v1718, %v1710
        %v1911 = vpack.c.b16 %v1719, %v1711
        %v1912 = vpack.c.b16 %v1720, %v1712
        %v1913 = vpack.c.b16 %v1729, %v1721
        %v1914 = vpack.c.b16 %v1730, %v1722
        %v1915 = vpack.c.b16 %v1731, %v1723
        %v1916 = vpack.c.b16 %v1732, %v1724
        %v1917 = vpack.c.b16 %v1733, %v1725
        %v1918 = vpack.c.b16 %v1734, %v1726
        %v1919 = vpack.c.b16 %v1735, %v1727
        %v1920 = vpack.c.b16 %v1736, %v1728
        %v1921 = vpack.c.b16 %v1745, %v1737
        %v1922 = vpack.c.b16 %v1746, %v1738
        %v1923 = vpack.c.b16 %v1747, %v1739
        %v1924 = vpack.c.b16 %v1748, %v1740
        %v1925 = vpack.c.b16 %v1749, %v1741
        %v1926 = vpack.c.b16 %v1750, %v1742
        %v1927 = vpack.c.b16 %v1751, %v1743
        %v1928 = vpack.c.b16 %v1752, %v1744
        %v1929 = vpack.c.b16 %v1761, %v1753
        %v1930 = vpack.c.b16 %v1762, %v1754
        %v1931 = vpack.c.b16 %v1763, %v1755
        %v1932 = vpack.c.b16 %v1764, %v1756
        %v1933 = vpack.c.b16 %v1765, %v1757
        %v1934 = vpack.c.b16 %v1766, %v1758
        %v1935 = vpack.c.b16 %v1767, %v1759
        %v1936 = vpack.c.b16 %v1768, %v1760
        %v1937 = vpack.c.b16 %v1777, %v1769
        %v1938 = vpack.c.b16 %v1778, %v1770
        %v1939 = vpack.c.b16 %v1779, %v1771
        %v1940 = vpack.c.b16 %v1780, %v1772
        %v1941 = vpack.c.b16 %v1781, %v1773
        %v1942 = vpack.c.b16 %v1782, %v1774
        %v1943 = vpack.c.b16 %v1783, %v1775
        %v1944 = vpack.c.b16 %v1784, %v1776
        %v1945 = vpack.c.b16 %v1793, %v1785
        %v1946 = vpack.c.b16 %v1794, %v1786
        %v1947 = vpack.c.b16 %v1795, %v1787
        %v1948 = vpack.c.b16 %v1796, %v1788
        %v1949 = vpack.c.b16 %v1797, %v1789
        %v1950 = vpack.c.b16 %v1798, %v1790
        %v1951 = vpack.c.b16 %v1799, %v1791
        %v1952 = vpack.c.b16 %v1800, %v1792
        %v1953 = vpack.c.b16 %v1809, %v1801
        %v1954 = vpack.c.b16 %v1810, %v1802
        %v1955 = vpack.c.b16 %v1811, %v1803
        %v1956 = vpack.c.b16 %v1812, %v1804
        %v1957 = vpack.c.b16 %v1813, %v1805
        %v1958 = vpack.c.b16 %v1814, %v1806
        %v1959 = vpack.c.b16 %v1815, %v1807
        %v1960 = vpack.c.b16 %v1816, %v1808
        %v1961 = vpack.c.b16 %v1825, %v1817
        %v1962 = vpack.c.b16 %v1826, %v1818
        %v1963 = vpack.c.b16 %v1827, %v1819
        %v1964 = vpack.c.b16 %v1828, %v1820
        %v1965 = vpack.c.b16 %v1829, %v1821
        %v1966 = vpack.c.b16 %v1830, %v1822
        %v1967 = vpack.c.b16 %v1831, %v1823
        %v1968 = vpack.c.b16 %v1832, %v1824
        %v1969 = vpack.c.b16 %v1841, %v1833
        %v1970 = vpack.c.b16 %v1842, %v1834
        %v1971 = vpack.c.b16 %v1843, %v1835
        %v1972 = vpack.c.b16 %v1844, %v1836
        %v1973 = vpack.c.b16 %v1845, %v1837
        %v1974 = vpack.c.b16 %v1846, %v1838
        %v1975 = vpack.c.b16 %v1847, %v1839
        %v1976 = vpack.c.b16 %v1848, %v1840
        %v1977 = vpack.c.b16 %v1857, %v1849
        %v1978 = vpack.c.b16 %v1858, %v1850
        %v1979 = vpack.c.b16 %v1859, %v1851
        %v1980 = vpack.c.b16 %v1860, %v1852
        %v1981 = vpack.c.b16 %v1861, %v1853
        %v1982 = vpack.c.b16 %v1862, %v1854
        %v1983 = vpack.c.b16 %v1863, %v1855
        %v1984 = vpack.c.b16 %v1864, %v1856
        %v1985 = vpack.c.b16 %v1873, %v1865
        %v1986 = vpack.c.b16 %v1874, %v1866
        %v1987 = vpack.c.b16 %v1875, %v1867
        %v1988 = vpack.c.b16 %v1876, %v1868
        %v1989 = vpack.c.b16 %v1877, %v1869
        %v1990 = vpack.c.b16 %v1878, %v1870
        %v1991 = vpack.c.b16 %v1879, %v1871
        %v1992 = vpack.c.b16 %v1880, %v1872
        %v1993 = vpack.c.b16 %v1881, %v1881
        %v1994 = vpack.c.b16 %v1882, %v1882
        %v1995 = vpack.c.b16 %v1883, %v1883
        %v1996 = vpack.c.b16 %v1884, %v1884
        %v1997 = vpack.c.b16 %v1885, %v1885
        %v1998 = vpack.c.b16 %v1886, %v1886
        %v1999 = vpack.c.b16 %v1887, %v1887
        %v2000 = vpack.c.b16 %v1888, %v1888
        %vm2105 = vcmask 719872
        %v2107 = vsel %vm2105, %v1456, 0
        %vm2109 = vcmask 1043456
        %v2111 = vsel %vm2109, %v1993, 0
        %v2114 = vsel %vm2109, %v1994, 0
        %v2117 = vsel %vm2109, %v1995, 0
        %v2120 = vsel %vm2109, %v1996, 0
        %v2123 = vsel %vm2109, %v1997, 0
        %v2126 = vsel %vm2109, %v1998, 0
        %v2129 = vsel %vm2109, %v1999, 0
        %v2132 = vsel %vm2109, %v2000, 0
        %2134 = vmatprep.subr.bf16.mxu0 %v1890
        %2135 = vmatpush1.bf16.msra.mxu0 %v1889
        %2136 = vmatprep.subr.bf16.mxu0 %v1898
        %2137 = vmatpush1.bf16.msra.mxu0 %v1897
        %2138 = vmatprep.subr.bf16.mxu0 %v1906
        %2139 = vmatpush1.bf16.msra.mxu0 %v1905
        %2140 = vmatprep.subr.bf16.mxu0 %v1914
        %2141 = vmatpush1.bf16.msra.mxu0 %v1913
        %2142 = vmatprep.subr.bf16.mxu0 %v1922
        %2143 = vmatpush1.bf16.msra.mxu0 %v1921
        %2144 = vmatprep.subr.bf16.mxu0 %v1930
        %2145 = vmatpush1.bf16.msra.mxu0 %v1929
        %2146 = vmatprep.subr.bf16.mxu0 %v1938
        %2147 = vmatpush1.bf16.msra.mxu0 %v1937
        %2148 = vmatprep.subr.bf16.mxu0 %v1946
        %2149 = vmatpush1.bf16.msra.mxu0 %v1945
        %2150 = vmatprep.subr.bf16.mxu0 %v1954
        %2151 = vmatpush1.bf16.msra.mxu0 %v1953
        %2152 = vmatprep.subr.bf16.mxu0 %v1962
        %2153 = vmatpush1.bf16.msra.mxu0 %v1961
        %2154 = vmatprep.subr.bf16.mxu0 %v1970
        %2155 = vmatpush1.bf16.msra.mxu0 %v1969
        %2156 = vmatprep.subr.bf16.mxu0 %v1978
        %2157 = vmatpush1.bf16.msra.mxu0 %v1977
        %2158 = vmatprep.subr.bf16.mxu0 %v1986
        %2159 = vmatpush1.bf16.msra.mxu0 %v1985
        %2160 = vmatprep.subr.bf16.mxu0 %v2114
        %2161 = vmatpush1.bf16.msra.mxu0 %v2111
        %2162 = vmatprep.subr.bf16.mxu0 0
        %2163 = vmatpush1.bf16.msra.mxu0 0
        %2164 = vmatprep.subr.bf16.mxu0 0
        %2165 = vmatpush1.bf16.msra.mxu0 0
        %2166 = vmatprep.mubr.bf16.mxu0 %v2107
        %2167 = vmatmul.mubr.bf16.gmra.mrb[0].mxu0 %v1455
        %v2168 = vpop.f32.mrb[0].mxu0
        %v2169 = vadd.f32 0.0, %v2168
        %v2170 = vpop.f32.mrb[0].mxu0
        %v2171 = vadd.f32 0.0, %v2170
        %v2172 = vpop.f32.mrb[0].mxu0
        %v2173 = vadd.f32 0.0, %v2172
        %v2174 = vpop.f32.mrb[0].mxu0
        %v2175 = vadd.f32 0.0, %v2174
        %2176 = vdwg.mxu0
        %2177 = vmatprep.subr.bf16.mxu0 %v1892
        %2178 = vmatpush1.bf16.msra.mxu0 %v1891
        %2179 = vmatprep.subr.bf16.mxu0 %v1900
        %2180 = vmatpush1.bf16.msra.mxu0 %v1899
        %2181 = vmatprep.subr.bf16.mxu0 %v1908
        %2182 = vmatpush1.bf16.msra.mxu0 %v1907
        %2183 = vmatprep.subr.bf16.mxu0 %v1916
        %2184 = vmatpush1.bf16.msra.mxu0 %v1915
        %2185 = vmatprep.subr.bf16.mxu0 %v1924
        %2186 = vmatpush1.bf16.msra.mxu0 %v1923
        %2187 = vmatprep.subr.bf16.mxu0 %v1932
        %2188 = vmatpush1.bf16.msra.mxu0 %v1931
        %2189 = vmatprep.subr.bf16.mxu0 %v1940
        %2190 = vmatpush1.bf16.msra.mxu0 %v1939
        %2191 = vmatprep.subr.bf16.mxu0 %v1948
        %2192 = vmatpush1.bf16.msra.mxu0 %v1947
        %2193 = vmatprep.subr.bf16.mxu0 %v1956
        %2194 = vmatpush1.bf16.msra.mxu0 %v1955
        %2195 = vmatprep.subr.bf16.mxu0 %v1964
        %2196 = vmatpush1.bf16.msra.mxu0 %v1963
        %2197 = vmatprep.subr.bf16.mxu0 %v1972
        %2198 = vmatpush1.bf16.msra.mxu0 %v1971
        %2199 = vmatprep.subr.bf16.mxu0 %v1980
        %2200 = vmatpush1.bf16.msra.mxu0 %v1979
        %2201 = vmatprep.subr.bf16.mxu0 %v1988
        %2202 = vmatpush1.bf16.msra.mxu0 %v1987
        %2203 = vmatprep.subr.bf16.mxu0 %v2120
        %2204 = vmatpush1.bf16.msra.mxu0 %v2117
        %2205 = vmatprep.subr.bf16.mxu0 0
        %2206 = vmatpush1.bf16.msra.mxu0 0
        %2207 = vmatprep.subr.bf16.mxu0 0
        %2208 = vmatpush1.bf16.msra.mxu0 0
        %2209 = vmatprep.mubr.bf16.mxu0 %v2107
        %2210 = vmatmul.mubr.bf16.gmra.mrb[0].mxu0 %v1455
        %v2211 = vpop.f32.mrb[0].mxu0
        %v2212 = vadd.f32 0.0, %v2211
        %v2213 = vpop.f32.mrb[0].mxu0
        %v2214 = vadd.f32 0.0, %v2213
        %v2215 = vpop.f32.mrb[0].mxu0
        %v2216 = vadd.f32 0.0, %v2215
        %v2217 = vpop.f32.mrb[0].mxu0
        %v2218 = vadd.f32 0.0, %v2217
        %2219 = vdwg.mxu0
        %2220 = vmatprep.subr.bf16.mxu0 %v1894
        %2221 = vmatpush1.bf16.msra.mxu0 %v1893
        %2222 = vmatprep.subr.bf16.mxu0 %v1902
        %2223 = vmatpush1.bf16.msra.mxu0 %v1901
        %2224 = vmatprep.subr.bf16.mxu0 %v1910
        %2225 = vmatpush1.bf16.msra.mxu0 %v1909
        %2226 = vmatprep.subr.bf16.mxu0 %v1918
        %2227 = vmatpush1.bf16.msra.mxu0 %v1917
        %2228 = vmatprep.subr.bf16.mxu0 %v1926
        %2229 = vmatpush1.bf16.msra.mxu0 %v1925
        %2230 = vmatprep.subr.bf16.mxu0 %v1934
        %2231 = vmatpush1.bf16.msra.mxu0 %v1933
        %2232 = vmatprep.subr.bf16.mxu0 %v1942
        %2233 = vmatpush1.bf16.msra.mxu0 %v1941
        %2234 = vmatprep.subr.bf16.mxu0 %v1950
        %2235 = vmatpush1.bf16.msra.mxu0 %v1949
        %2236 = vmatprep.subr.bf16.mxu0 %v1958
        %2237 = vmatpush1.bf16.msra.mxu0 %v1957
        %2238 = vmatprep.subr.bf16.mxu0 %v1966
        %2239 = vmatpush1.bf16.msra.mxu0 %v1965
        %2240 = vmatprep.subr.bf16.mxu0 %v1974
        %2241 = vmatpush1.bf16.msra.mxu0 %v1973
        %2242 = vmatprep.subr.bf16.mxu0 %v1982
        %2243 = vmatpush1.bf16.msra.mxu0 %v1981
        %2244 = vmatprep.subr.bf16.mxu0 %v1990
        %2245 = vmatpush1.bf16.msra.mxu0 %v1989
        %2246 = vmatprep.subr.bf16.mxu0 %v2126
        %2247 = vmatpush1.bf16.msra.mxu0 %v2123
        %2248 = vmatprep.subr.bf16.mxu0 0
        %2249 = vmatpush1.bf16.msra.mxu0 0
        %2250 = vmatprep.subr.bf16.mxu0 0
        %2251 = vmatpush1.bf16.msra.mxu0 0
        %2252 = vmatprep.mubr.bf16.mxu0 %v2107
        %2253 = vmatmul.mubr.bf16.gmra.mrb[0].mxu0 %v1455
        %v2254 = vpop.f32.mrb[0].mxu0
        %v2255 = vadd.f32 0.0, %v2254
        %v2256 = vpop.f32.mrb[0].mxu0
        %v2257 = vadd.f32 0.0, %v2256
        %v2258 = vpop.f32.mrb[0].mxu0
        %v2259 = vadd.f32 0.0, %v2258
        %v2260 = vpop.f32.mrb[0].mxu0
        %v2261 = vadd.f32 0.0, %v2260
        %2262 = vdwg.mxu0
        %2263 = vmatprep.subr.bf16.mxu0 %v1896
        %2264 = vmatpush1.bf16.msra.mxu0 %v1895
        %2265 = vmatprep.subr.bf16.mxu0 %v1904
        %2266 = vmatpush1.bf16.msra.mxu0 %v1903
        %2267 = vmatprep.subr.bf16.mxu0 %v1912
        %2268 = vmatpush1.bf16.msra.mxu0 %v1911
        %2269 = vmatprep.subr.bf16.mxu0 %v1920
        %2270 = vmatpush1.bf16.msra.mxu0 %v1919
        %2271 = vmatprep.subr.bf16.mxu0 %v1928
        %2272 = vmatpush1.bf16.msra.mxu0 %v1927
        %2273 = vmatprep.subr.bf16.mxu0 %v1936
        %2274 = vmatpush1.bf16.msra.mxu0 %v1935
        %2275 = vmatprep.subr.bf16.mxu0 %v1944
        %2276 = vmatpush1.bf16.msra.mxu0 %v1943
        %2277 = vmatprep.subr.bf16.mxu0 %v1952
        %2278 = vmatpush1.bf16.msra.mxu0 %v1951
        %2279 = vmatprep.subr.bf16.mxu0 %v1960
        %2280 = vmatpush1.bf16.msra.mxu0 %v1959
        %2281 = vmatprep.subr.bf16.mxu0 %v1968
        %2282 = vmatpush1.bf16.msra.mxu0 %v1967
        %2283 = vmatprep.subr.bf16.mxu0 %v1976
        %2284 = vmatpush1.bf16.msra.mxu0 %v1975
        %2285 = vmatprep.subr.bf16.mxu0 %v1984
        %2286 = vmatpush1.bf16.msra.mxu0 %v1983
        %2287 = vmatprep.subr.bf16.mxu0 %v1992
        %2288 = vmatpush1.bf16.msra.mxu0 %v1991
        %2289 = vmatprep.subr.bf16.mxu0 %v2132
        %2290 = vmatpush1.bf16.msra.mxu0 %v2129
        %2291 = vmatprep.subr.bf16.mxu0 0
        %2292 = vmatpush1.bf16.msra.mxu0 0
        %2293 = vmatprep.subr.bf16.mxu0 0
        %2294 = vmatpush1.bf16.msra.mxu0 0
        %2295 = vmatprep.mubr.bf16.mxu0 %v2107
        %2296 = vmatmul.mubr.bf16.gmra.mrb[0].mxu0 %v1455
        %v2297 = vpop.f32.mrb[0].mxu0
        %v2298 = vadd.f32 0.0, %v2297
        %v2299 = vpop.f32.mrb[0].mxu0
        %v2300 = vadd.f32 0.0, %v2299
        %v2301 = vpop.f32.mrb[0].mxu0
        %v2302 = vadd.f32 0.0, %v2301
        %v2303 = vpop.f32.mrb[0].mxu0
        %v2304 = vadd.f32 0.0, %v2303
        %2305 = vdwg.mxu0
        %v2306 = vld [vmem:[%s7] sm:$0xff]
        %v2307 = vld [vmem:[%s7 + $0x8] sm:$0xff]
        %v2308 = vld [vmem:[%s7 + $0x10] sm:$0xff]
        %v2309 = vld [vmem:[%s7 + $0x18] sm:$0xff]
        %v2310 = vld [vmem:[%s7 + $0x20] sm:$0xff]
        %v2311 = vld [vmem:[%s7 + $0x28] sm:$0xff]
        %v2312 = vld [vmem:[%s7 + $0x30] sm:$0xff]
        %v2313 = vld [vmem:[%s7 + $0x38] sm:$0xff]
        %v2314 = vld [vmem:[%s7 + $0x40] sm:$0xff]
        %v2315 = vld [vmem:[%s7 + $0x48] sm:$0xff]
        %v2316 = vld [vmem:[%s7 + $0x50] sm:$0xff]
        %v2317 = vld [vmem:[%s7 + $0x58] sm:$0xff]
        %v2318 = vld [vmem:[%s7 + $0x60] sm:$0xff]
        %v2319 = vld [vmem:[%s7 + $0x68] sm:$0xff]
        %v2320 = vld [vmem:[%s7 + $0x70] sm:$0xff]
        %v2321 = vld [vmem:[%s7 + $0x78] sm:$0xff]
        %v2322 = vmul.f32 %v2169, %v2306
        %v2323 = vmul.f32 %v2171, %v2307
        %v2324 = vmul.f32 %v2212, %v2308
        %v2325 = vmul.f32 %v2214, %v2309
        %v2326 = vmul.f32 %v2255, %v2310
        %v2327 = vmul.f32 %v2257, %v2311
        %v2328 = vmul.f32 %v2298, %v2312
        %v2329 = vmul.f32 %v2300, %v2313
        %v2330 = vmul.f32 %v2173, %v2314
        %v2331 = vmul.f32 %v2175, %v2315
        %v2332 = vmul.f32 %v2216, %v2316
        %v2333 = vmul.f32 %v2218, %v2317
        %v2334 = vmul.f32 %v2259, %v2318
        %v2335 = vmul.f32 %v2261, %v2319
        %v2336 = vmul.f32 %v2302, %v2320
        %v2337 = vmul.f32 %v2304, %v2321
        %v2338 = vadd.f32 %v2322, %v2330
        %v2339 = vrot.slane %v2338, 4
        %v2340 = vadd.f32 %v2338, %v2339
        %v2341 = vrot.slane %v2340, 2
        %v2342 = vadd.f32 %v2340, %v2341
        %v2343 = vrot.slane %v2342, 1
        %v2344 = vadd.f32 %v2342, %v2343
        %v2345 = vadd.f32 %v2323, %v2331
        %v2346 = vrot.slane %v2345, 4
        %v2347 = vadd.f32 %v2345, %v2346
        %v2348 = vrot.slane %v2347, 2
        %v2349 = vadd.f32 %v2347, %v2348
        %v2350 = vrot.slane %v2349, 1
        %v2351 = vadd.f32 %v2349, %v2350
        %v2352 = vadd.f32 %v2324, %v2332
        %v2353 = vrot.slane %v2352, 4
        %v2354 = vadd.f32 %v2352, %v2353
        %v2355 = vrot.slane %v2354, 2
        %v2356 = vadd.f32 %v2354, %v2355
        %v2357 = vrot.slane %v2356, 1
        %v2358 = vadd.f32 %v2356, %v2357
        %v2359 = vadd.f32 %v2325, %v2333
        %v2360 = vrot.slane %v2359, 4
        %v2361 = vadd.f32 %v2359, %v2360
        %v2362 = vrot.slane %v2361, 2
        %v2363 = vadd.f32 %v2361, %v2362
        %v2364 = vrot.slane %v2363, 1
        %v2365 = vadd.f32 %v2363, %v2364
        %v2366 = vadd.f32 %v2326, %v2334
        %v2367 = vrot.slane %v2366, 4
        %v2368 = vadd.f32 %v2366, %v2367
        %v2369 = vrot.slane %v2368, 2
        %v2370 = vadd.f32 %v2368, %v2369
        %v2371 = vrot.slane %v2370, 1
        %v2372 = vadd.f32 %v2370, %v2371
        %v2373 = vadd.f32 %v2327, %v2335
        %v2374 = vrot.slane %v2373, 4
        %v2375 = vadd.f32 %v2373, %v2374
        %v2376 = vrot.slane %v2375, 2
        %v2377 = vadd.f32 %v2375, %v2376
        %v2378 = vrot.slane %v2377, 1
        %v2379 = vadd.f32 %v2377, %v2378
        %v2380 = vadd.f32 %v2328, %v2336
        %v2381 = vrot.slane %v2380, 4
        %v2382 = vadd.f32 %v2380, %v2381
        %v2383 = vrot.slane %v2382, 2
        %v2384 = vadd.f32 %v2382, %v2383
        %v2385 = vrot.slane %v2384, 1
        %v2386 = vadd.f32 %v2384, %v2385
        %v2387 = vadd.f32 %v2329, %v2337
        %v2388 = vrot.slane %v2387, 4
        %v2389 = vadd.f32 %v2387, %v2388
        %v2390 = vrot.slane %v2389, 2
        %v2391 = vadd.f32 %v2389, %v2390
        %v2392 = vrot.slane %v2391, 1
        %v2393 = vadd.f32 %v2391, %v2392
        %v2394 = vpack.c.bf16 %v2344, %v2344
        %v2395 = vpack.c.bf16 %v2351, %v2351
        %v2396 = vpack.c.bf16 %v2358, %v2358
        %v2397 = vpack.c.bf16 %v2365, %v2365
        %v2398 = vpack.c.bf16 %v2372, %v2372
        %v2399 = vpack.c.bf16 %v2379, %v2379
        %v2400 = vpack.c.bf16 %v2386, %v2386
        %v2401 = vpack.c.bf16 %v2393, %v2393
        %v2402 = vld [vmem:[%s8] sm:$0xf]
        %v2403 = vld [vmem:[%s8 + $0x4] sm:$0xf]
        %v2404 = vld [vmem:[%s8 + $0x8] sm:$0xf]
        %v2405 = vld [vmem:[%s8 + $0xc] sm:$0xf]
        %v2406 = vld [vmem:[%s8 + $0x10] sm:$0xf]
        %v2407 = vld [vmem:[%s8 + $0x14] sm:$0xf]
        %v2408 = vld [vmem:[%s8 + $0x18] sm:$0xf]
        %v2409 = vld [vmem:[%s8 + $0x1c] sm:$0xf]
        %v2410 = vld [vmem:[%s8 + $0x20] sm:$0xf]
        %v2411 = vld [vmem:[%s8 + $0x24] sm:$0xf]
        %v2412 = vld [vmem:[%s8 + $0x28] sm:$0xf]
        %v2413 = vld [vmem:[%s8 + $0x2c] sm:$0xf]
        %v2414 = vld [vmem:[%s8 + $0x30] sm:$0xf]
        %v2415 = vld [vmem:[%s8 + $0x34] sm:$0xf]
        %v2416 = vld [vmem:[%s8 + $0x38] sm:$0xf]
        %v2417 = vld [vmem:[%s8 + $0x3c] sm:$0xf]
        %v2418 = vld [vmem:[%s8 + $0x40] sm:$0xf]
        %v2419 = vld [vmem:[%s8 + $0x44] sm:$0xf]
        %v2420 = vld [vmem:[%s8 + $0x48] sm:$0xf]
        %v2421 = vld [vmem:[%s8 + $0x4c] sm:$0xf]
        %v2422 = vld [vmem:[%s8 + $0x50] sm:$0xf]
        %v2423 = vld [vmem:[%s8 + $0x54] sm:$0xf]
        %v2424 = vld [vmem:[%s8 + $0x58] sm:$0xf]
        %v2425 = vld [vmem:[%s8 + $0x5c] sm:$0xf]
        %v2426 = vld [vmem:[%s8 + $0x60] sm:$0xf]
        %v2427 = vld [vmem:[%s8 + $0x64] sm:$0xf]
        %v2428 = vld [vmem:[%s8 + $0x68] sm:$0xf]
        %v2429 = vld [vmem:[%s8 + $0x6c] sm:$0xf]
        %v2430 = vld [vmem:[%s8 + $0x70] sm:$0xf]
        %v2431 = vld [vmem:[%s8 + $0x74] sm:$0xf]
        %v2432 = vld [vmem:[%s8 + $0x78] sm:$0xf]
        %v2433 = vld [vmem:[%s8 + $0x7c] sm:$0xf]
        %v2434 = vld [vmem:[%s8 + $0x80] sm:$0xf]
        %v2435 = vld [vmem:[%s8 + $0x84] sm:$0xf]
        %v2436 = vld [vmem:[%s8 + $0x88] sm:$0xf]
        %v2437 = vld [vmem:[%s8 + $0x8c] sm:$0xf]
        %v2438 = vld [vmem:[%s8 + $0x90] sm:$0xf]
        %v2439 = vld [vmem:[%s8 + $0x94] sm:$0xf]
        %v2440 = vld [vmem:[%s8 + $0x98] sm:$0xf]
        %v2441 = vld [vmem:[%s8 + $0x9c] sm:$0xf]
        %v2442 = vld [vmem:[%s8 + $0xa0] sm:$0xf]
        %v2443 = vld [vmem:[%s8 + $0xa4] sm:$0xf]
        %v2444 = vld [vmem:[%s8 + $0xa8] sm:$0xf]
        %v2445 = vld [vmem:[%s8 + $0xac] sm:$0xf]
        %v2446 = vld [vmem:[%s8 + $0xb0] sm:$0xf]
        %v2447 = vld [vmem:[%s8 + $0xb4] sm:$0xf]
        %v2448 = vld [vmem:[%s8 + $0xb8] sm:$0xf]
        %v2449 = vld [vmem:[%s8 + $0xbc] sm:$0xf]
        %v2450 = vld [vmem:[%s8 + $0xc0] sm:$0xf]
        %v2451 = vld [vmem:[%s8 + $0xc4] sm:$0xf]
        %v2452 = vld [vmem:[%s8 + $0xc8] sm:$0xf]
        %v2453 = vld [vmem:[%s8 + $0xcc] sm:$0xf]
        %v2454 = vld [vmem:[%s8 + $0xd0] sm:$0xf]
        %v2455 = vld [vmem:[%s8 + $0xd4] sm:$0xf]
        %v2456 = vld [vmem:[%s8 + $0xd8] sm:$0xf]
        %v2457 = vld [vmem:[%s8 + $0xdc] sm:$0xf]
        %v2458 = vld [vmem:[%s8 + $0xe0] sm:$0xf]
        %v2459 = vld [vmem:[%s8 + $0xe4] sm:$0xf]
        %v2460 = vld [vmem:[%s8 + $0xe8] sm:$0xf]
        %v2461 = vld [vmem:[%s8 + $0xec] sm:$0xf]
        %v2462 = vld [vmem:[%s8 + $0xf0] sm:$0xf]
        %v2463 = vld [vmem:[%s8 + $0xf4] sm:$0xf]
        %v2464 = vld [vmem:[%s8 + $0xf8] sm:$0xf]
        %v2465 = vld [vmem:[%s8 + $0xfc] sm:$0xf]
        %v2466 = vld [vmem:[%s8 + $0x100] sm:$0xf]
        %v2467 = vld [vmem:[%s8 + $0x104] sm:$0xf]
        %v2468 = vld [vmem:[%s8 + $0x108] sm:$0xf]
        %v2469 = vld [vmem:[%s8 + $0x10c] sm:$0xf]
        %v2470 = vld [vmem:[%s8 + $0x110] sm:$0xf]
        %v2471 = vld [vmem:[%s8 + $0x114] sm:$0xf]
        %v2472 = vld [vmem:[%s8 + $0x118] sm:$0xf]
        %v2473 = vld [vmem:[%s8 + $0x11c] sm:$0xf]
        %v2474 = vld [vmem:[%s8 + $0x120] sm:$0xf]
        %v2475 = vld [vmem:[%s8 + $0x124] sm:$0xf]
        %v2476 = vld [vmem:[%s8 + $0x128] sm:$0xf]
        %v2477 = vld [vmem:[%s8 + $0x12c] sm:$0xf]
        %v2478 = vld [vmem:[%s8 + $0x130] sm:$0xf]
        %v2479 = vld [vmem:[%s8 + $0x134] sm:$0xf]
        %v2480 = vld [vmem:[%s8 + $0x138] sm:$0xf]
        %v2481 = vld [vmem:[%s8 + $0x13c] sm:$0xf]
        %v2482 = vld [vmem:[%s8 + $0x140] sm:$0xf]
        %v2483 = vld [vmem:[%s8 + $0x144] sm:$0xf]
        %v2484 = vld [vmem:[%s8 + $0x148] sm:$0xf]
        %v2485 = vld [vmem:[%s8 + $0x14c] sm:$0xf]
        %v2486 = vld [vmem:[%s8 + $0x150] sm:$0xf]
        %v2487 = vld [vmem:[%s8 + $0x154] sm:$0xf]
        %v2488 = vld [vmem:[%s8 + $0x158] sm:$0xf]
        %v2489 = vld [vmem:[%s8 + $0x15c] sm:$0xf]
        %v2490 = vld [vmem:[%s8 + $0x160] sm:$0xf]
        %v2491 = vld [vmem:[%s8 + $0x164] sm:$0xf]
        %v2492 = vld [vmem:[%s8 + $0x168] sm:$0xf]
        %v2493 = vld [vmem:[%s8 + $0x16c] sm:$0xf]
        %v2494 = vld [vmem:[%s8 + $0x170] sm:$0xf]
        %v2495 = vld [vmem:[%s8 + $0x174] sm:$0xf]
        %v2496 = vld [vmem:[%s8 + $0x178] sm:$0xf]
        %v2497 = vld [vmem:[%s8 + $0x17c] sm:$0xf]
        %v2498 = vld [vmem:[%s8 + $0x180] sm:$0xf]
        %v2499 = vld [vmem:[%s8 + $0x184] sm:$0xf]
        %v2500 = vld [vmem:[%s8 + $0x188] sm:$0xf]
        %v2501 = vld [vmem:[%s8 + $0x18c] sm:$0xf]
        %v2502 = vld [vmem:[%s8 + $0x190] sm:$0xf]
        %v2503 = vld [vmem:[%s8 + $0x194] sm:$0xf]
        %v2504 = vld [vmem:[%s8 + $0x198] sm:$0xf]
        %v2505 = vld [vmem:[%s8 + $0x19c] sm:$0xf]
        %v2506 = vld [vmem:[%s8 + $0x1a0] sm:$0xf]
        %v2507 = vld [vmem:[%s8 + $0x1a4] sm:$0xf]
        %v2508 = vld [vmem:[%s8 + $0x1a8] sm:$0xf]
        %v2509 = vld [vmem:[%s8 + $0x1ac] sm:$0xf]
        %v2510 = vld [vmem:[%s8 + $0x1b0] sm:$0xf]
        %v2511 = vld [vmem:[%s8 + $0x1b4] sm:$0xf]
        %v2512 = vld [vmem:[%s8 + $0x1b8] sm:$0xf]
        %v2513 = vld [vmem:[%s8 + $0x1bc] sm:$0xf]
        %v2514 = vld [vmem:[%s8 + $0x1c0] sm:$0xf]
        %v2515 = vld [vmem:[%s8 + $0x1c4] sm:$0xf]
        %v2516 = vld [vmem:[%s8 + $0x1c8] sm:$0xf]
        %v2517 = vld [vmem:[%s8 + $0x1cc] sm:$0xf]
        %v2518 = vld [vmem:[%s8 + $0x1d0] sm:$0xf]
        %v2519 = vld [vmem:[%s8 + $0x1d4] sm:$0xf]
        %v2520 = vld [vmem:[%s8 + $0x1d8] sm:$0xf]
        %v2521 = vld [vmem:[%s8 + $0x1dc] sm:$0xf]
        %v2522 = vld [vmem:[%s8 + $0x1e0] sm:$0xf]
        %v2523 = vld [vmem:[%s8 + $0x1e4] sm:$0xf]
        %v2524 = vld [vmem:[%s8 + $0x1e8] sm:$0xf]
        %v2525 = vld [vmem:[%s8 + $0x1ec] sm:$0xf]
        %v2526 = vld [vmem:[%s8 + $0x1f0] sm:$0xf]
        %v2527 = vld [vmem:[%s8 + $0x1f4] sm:$0xf]
        %v2528 = vld [vmem:[%s8 + $0x1f8] sm:$0xf]
        %v2529 = vld [vmem:[%s8 + $0x1fc] sm:$0xf]
        %v2530 = vld [vmem:[%s9] sm:$0x1]
        %v2659 = vunpack.c.l.b16 %v2402
        %v2660 = vunpack.c.l.b16 %v2403
        %v2661 = vunpack.c.l.b16 %v2404
        %v2662 = vunpack.c.l.b16 %v2405
        %v2663 = vunpack.c.l.b16 %v2406
        %v2664 = vunpack.c.l.b16 %v2407
        %v2665 = vunpack.c.l.b16 %v2408
        %v2666 = vunpack.c.l.b16 %v2409
        %v2667 = vunpack.c.l.b16 %v2410
        %v2668 = vunpack.c.l.b16 %v2411
        %v2669 = vunpack.c.l.b16 %v2412
        %v2670 = vunpack.c.l.b16 %v2413
        %v2671 = vunpack.c.l.b16 %v2414
        %v2672 = vunpack.c.l.b16 %v2415
        %v2673 = vunpack.c.l.b16 %v2416
        %v2674 = vunpack.c.l.b16 %v2417
        %v2675 = vunpack.c.l.b16 %v2418
        %v2676 = vunpack.c.l.b16 %v2419
        %v2677 = vunpack.c.l.b16 %v2420
        %v2678 = vunpack.c.l.b16 %v2421
        %v2679 = vunpack.c.l.b16 %v2422
        %v2680 = vunpack.c.l.b16 %v2423
        %v2681 = vunpack.c.l.b16 %v2424
        %v2682 = vunpack.c.l.b16 %v2425
        %v2683 = vunpack.c.l.b16 %v2426
        %v2684 = vunpack.c.l.b16 %v2427
        %v2685 = vunpack.c.l.b16 %v2428
        %v2686 = vunpack.c.l.b16 %v2429
        %v2687 = vunpack.c.l.b16 %v2430
        %v2688 = vunpack.c.l.b16 %v2431
        %v2689 = vunpack.c.l.b16 %v2432
        %v2690 = vunpack.c.l.b16 %v2433
        %v2691 = vunpack.c.l.b16 %v2434
        %v2692 = vunpack.c.l.b16 %v2435
        %v2693 = vunpack.c.l.b16 %v2436
        %v2694 = vunpack.c.l.b16 %v2437
        %v2695 = vunpack.c.l.b16 %v2438
        %v2696 = vunpack.c.l.b16 %v2439
        %v2697 = vunpack.c.l.b16 %v2440
        %v2698 = vunpack.c.l.b16 %v2441
        %v2699 = vunpack.c.l.b16 %v2442
        %v2700 = vunpack.c.l.b16 %v2443
        %v2701 = vunpack.c.l.b16 %v2444
        %v2702 = vunpack.c.l.b16 %v2445
        %v2703 = vunpack.c.l.b16 %v2446
        %v2704 = vunpack.c.l.b16 %v2447
        %v2705 = vunpack.c.l.b16 %v2448
        %v2706 = vunpack.c.l.b16 %v2449
        %v2707 = vunpack.c.l.b16 %v2450
        %v2708 = vunpack.c.l.b16 %v2451
        %v2709 = vunpack.c.l.b16 %v2452
        %v2710 = vunpack.c.l.b16 %v2453
        %v2711 = vunpack.c.l.b16 %v2454
        %v2712 = vunpack.c.l.b16 %v2455
        %v2713 = vunpack.c.l.b16 %v2456
        %v2714 = vunpack.c.l.b16 %v2457
        %v2715 = vunpack.c.l.b16 %v2458
        %v2716 = vunpack.c.l.b16 %v2459
        %v2717 = vunpack.c.l.b16 %v2460
        %v2718 = vunpack.c.l.b16 %v2461
        %v2719 = vunpack.c.l.b16 %v2462
        %v2720 = vunpack.c.l.b16 %v2463
        %v2721 = vunpack.c.l.b16 %v2464
        %v2722 = vunpack.c.l.b16 %v2465
        %v2723 = vunpack.c.l.b16 %v2466
        %v2724 = vunpack.c.l.b16 %v2467
        %v2725 = vunpack.c.l.b16 %v2468
        %v2726 = vunpack.c.l.b16 %v2469
        %v2727 = vunpack.c.l.b16 %v2470
        %v2728 = vunpack.c.l.b16 %v2471
        %v2729 = vunpack.c.l.b16 %v2472
        %v2730 = vunpack.c.l.b16 %v2473
        %v2731 = vunpack.c.l.b16 %v2474
        %v2732 = vunpack.c.l.b16 %v2475
        %v2733 = vunpack.c.l.b16 %v2476
        %v2734 = vunpack.c.l.b16 %v2477
        %v2735 = vunpack.c.l.b16 %v2478
        %v2736 = vunpack.c.l.b16 %v2479
        %v2737 = vunpack.c.l.b16 %v2480
        %v2738 = vunpack.c.l.b16 %v2481
        %v2739 = vunpack.c.l.b16 %v2482
        %v2740 = vunpack.c.l.b16 %v2483
        %v2741 = vunpack.c.l.b16 %v2484
        %v2742 = vunpack.c.l.b16 %v2485
        %v2743 = vunpack.c.l.b16 %v2486
        %v2744 = vunpack.c.l.b16 %v2487
        %v2745 = vunpack.c.l.b16 %v2488
        %v2746 = vunpack.c.l.b16 %v2489
        %v2747 = vunpack.c.l.b16 %v2490
        %v2748 = vunpack.c.l.b16 %v2491
        %v2749 = vunpack.c.l.b16 %v2492
        %v2750 = vunpack.c.l.b16 %v2493
        %v2751 = vunpack.c.l.b16 %v2494
        %v2752 = vunpack.c.l.b16 %v2495
        %v2753 = vunpack.c.l.b16 %v2496
        %v2754 = vunpack.c.l.b16 %v2497
        %v2755 = vunpack.c.l.b16 %v2498
        %v2756 = vunpack.c.l.b16 %v2499
        %v2757 = vunpack.c.l.b16 %v2500
        %v2758 = vunpack.c.l.b16 %v2501
        %v2759 = vunpack.c.l.b16 %v2502
        %v2760 = vunpack.c.l.b16 %v2503
        %v2761 = vunpack.c.l.b16 %v2504
        %v2762 = vunpack.c.l.b16 %v2505
        %v2763 = vunpack.c.l.b16 %v2506
        %v2764 = vunpack.c.l.b16 %v2507
        %v2765 = vunpack.c.l.b16 %v2508
        %v2766 = vunpack.c.l.b16 %v2509
        %v2767 = vunpack.c.l.b16 %v2510
        %v2768 = vunpack.c.l.b16 %v2511
        %v2769 = vunpack.c.l.b16 %v2512
        %v2770 = vunpack.c.l.b16 %v2513
        %v2771 = vunpack.c.l.b16 %v2514
        %v2772 = vunpack.c.l.b16 %v2515
        %v2773 = vunpack.c.l.b16 %v2516
        %v2774 = vunpack.c.l.b16 %v2517
        %v2775 = vunpack.c.l.b16 %v2518
        %v2776 = vunpack.c.l.b16 %v2519
        %v2777 = vunpack.c.l.b16 %v2520
        %v2778 = vunpack.c.l.b16 %v2521
        %v2779 = vunpack.c.l.b16 %v2522
        %v2780 = vunpack.c.l.b16 %v2523
        %v2781 = vunpack.c.l.b16 %v2524
        %v2782 = vunpack.c.l.b16 %v2525
        %v2783 = vunpack.c.l.b16 %v2526
        %v2784 = vunpack.c.l.b16 %v2527
        %v2785 = vunpack.c.l.b16 %v2528
        %v2786 = vunpack.c.l.b16 %v2529
        %v2787 = vpack.c.b16 %v2660, %v2659
        %v2788 = vpack.c.b16 %v2662, %v2661
        %v2789 = vpack.c.b16 %v2664, %v2663
        %v2790 = vpack.c.b16 %v2666, %v2665
        %v2791 = vpack.c.b16 %v2668, %v2667
        %v2792 = vpack.c.b16 %v2670, %v2669
        %v2793 = vpack.c.b16 %v2672, %v2671
        %v2794 = vpack.c.b16 %v2674, %v2673
        %v2795 = vpack.c.b16 %v2676, %v2675
        %v2796 = vpack.c.b16 %v2678, %v2677
        %v2797 = vpack.c.b16 %v2680, %v2679
        %v2798 = vpack.c.b16 %v2682, %v2681
        %v2799 = vpack.c.b16 %v2684, %v2683
        %v2800 = vpack.c.b16 %v2686, %v2685
        %v2801 = vpack.c.b16 %v2688, %v2687
        %v2802 = vpack.c.b16 %v2690, %v2689
        %v2803 = vpack.c.b16 %v2692, %v2691
        %v2804 = vpack.c.b16 %v2694, %v2693
        %v2805 = vpack.c.b16 %v2696, %v2695
        %v2806 = vpack.c.b16 %v2698, %v2697
        %v2807 = vpack.c.b16 %v2700, %v2699
        %v2808 = vpack.c.b16 %v2702, %v2701
        %v2809 = vpack.c.b16 %v2704, %v2703
        %v2810 = vpack.c.b16 %v2706, %v2705
        %v2811 = vpack.c.b16 %v2708, %v2707
        %v2812 = vpack.c.b16 %v2710, %v2709
        %v2813 = vpack.c.b16 %v2712, %v2711
        %v2814 = vpack.c.b16 %v2714, %v2713
        %v2815 = vpack.c.b16 %v2716, %v2715
        %v2816 = vpack.c.b16 %v2718, %v2717
        %v2817 = vpack.c.b16 %v2720, %v2719
        %v2818 = vpack.c.b16 %v2722, %v2721
        %v2819 = vpack.c.b16 %v2724, %v2723
        %v2820 = vpack.c.b16 %v2726, %v2725
        %v2821 = vpack.c.b16 %v2728, %v2727
        %v2822 = vpack.c.b16 %v2730, %v2729
        %v2823 = vpack.c.b16 %v2732, %v2731
        %v2824 = vpack.c.b16 %v2734, %v2733
        %v2825 = vpack.c.b16 %v2736, %v2735
        %v2826 = vpack.c.b16 %v2738, %v2737
        %v2827 = vpack.c.b16 %v2740, %v2739
        %v2828 = vpack.c.b16 %v2742, %v2741
        %v2829 = vpack.c.b16 %v2744, %v2743
        %v2830 = vpack.c.b16 %v2746, %v2745
        %v2831 = vpack.c.b16 %v2748, %v2747
        %v2832 = vpack.c.b16 %v2750, %v2749
        %v2833 = vpack.c.b16 %v2752, %v2751
        %v2834 = vpack.c.b16 %v2754, %v2753
        %v2835 = vpack.c.b16 %v2756, %v2755
        %v2836 = vpack.c.b16 %v2758, %v2757
        %v2837 = vpack.c.b16 %v2760, %v2759
        %v2838 = vpack.c.b16 %v2762, %v2761
        %v2839 = vpack.c.b16 %v2764, %v2763
        %v2840 = vpack.c.b16 %v2766, %v2765
        %v2841 = vpack.c.b16 %v2768, %v2767
        %v2842 = vpack.c.b16 %v2770, %v2769
        %v2843 = vpack.c.b16 %v2772, %v2771
        %v2844 = vpack.c.b16 %v2774, %v2773
        %v2845 = vpack.c.b16 %v2776, %v2775
        %v2846 = vpack.c.b16 %v2778, %v2777
        %v2847 = vpack.c.b16 %v2780, %v2779
        %v2848 = vpack.c.b16 %v2782, %v2781
        %v2849 = vpack.c.b16 %v2784, %v2783
        %v2850 = vpack.c.b16 %v2786, %v2785
        %2915 = vmatprep.subr.bf16.mxu0 0
        %2916 = vmatpush1.bf16.msra.mxu0 %v2787
        %2917 = vmatprep.subr.bf16.mxu0 0
        %2918 = vmatpush1.bf16.msra.mxu0 %v2788
        %2919 = vmatprep.subr.bf16.mxu0 0
        %2920 = vmatpush1.bf16.msra.mxu0 %v2789
        %2921 = vmatprep.subr.bf16.mxu0 0
        %2922 = vmatpush1.bf16.msra.mxu0 %v2790
        %2923 = vmatprep.subr.bf16.mxu0 0
        %2924 = vmatpush1.bf16.msra.mxu0 %v2791
        %2925 = vmatprep.subr.bf16.mxu0 0
        %2926 = vmatpush1.bf16.msra.mxu0 %v2792
        %2927 = vmatprep.subr.bf16.mxu0 0
        %2928 = vmatpush1.bf16.msra.mxu0 %v2793
        %2929 = vmatprep.subr.bf16.mxu0 0
        %2930 = vmatpush1.bf16.msra.mxu0 %v2794
        %2931 = vmatprep.subr.bf16.mxu0 0
        %2932 = vmatpush1.bf16.msra.mxu0 %v2795
        %2933 = vmatprep.subr.bf16.mxu0 0
        %2934 = vmatpush1.bf16.msra.mxu0 %v2796
        %2935 = vmatprep.subr.bf16.mxu0 0
        %2936 = vmatpush1.bf16.msra.mxu0 %v2797
        %2937 = vmatprep.subr.bf16.mxu0 0
        %2938 = vmatpush1.bf16.msra.mxu0 %v2798
        %2939 = vmatprep.subr.bf16.mxu0 0
        %2940 = vmatpush1.bf16.msra.mxu0 %v2799
        %2941 = vmatprep.subr.bf16.mxu0 0
        %2942 = vmatpush1.bf16.msra.mxu0 %v2800
        %2943 = vmatprep.subr.bf16.mxu0 0
        %2944 = vmatpush1.bf16.msra.mxu0 %v2801
        %2945 = vmatprep.subr.bf16.mxu0 0
        %2946 = vmatpush1.bf16.msra.mxu0 %v2802
        %2947 = vmatprep.mubr.bf16.mxu0 %v2395
        %2948 = vmatmul.mubr.bf16.gmra.mrb[0].mxu0 %v2394
        %v2949 = vpop.f32.mrb[0].mxu0
        %v2950 = vadd.f32 %v2530, %v2949
        %v2951 = vpop.f32.mrb[0].mxu0
        %v2952 = vpop.f32.mrb[0].mxu0
        %v2953 = vpop.f32.mrb[0].mxu0
        %2954 = vdwg.mxu0
        %2955 = vmatprep.subr.bf16.mxu0 0
        %2956 = vmatpush1.bf16.msra.mxu0 %v2803
        %2957 = vmatprep.subr.bf16.mxu0 0
        %2958 = vmatpush1.bf16.msra.mxu0 %v2804
        %2959 = vmatprep.subr.bf16.mxu0 0
        %2960 = vmatpush1.bf16.msra.mxu0 %v2805
        %2961 = vmatprep.subr.bf16.mxu0 0
        %2962 = vmatpush1.bf16.msra.mxu0 %v2806
        %2963 = vmatprep.subr.bf16.mxu0 0
        %2964 = vmatpush1.bf16.msra.mxu0 %v2807
        %2965 = vmatprep.subr.bf16.mxu0 0
        %2966 = vmatpush1.bf16.msra.mxu0 %v2808
        %2967 = vmatprep.subr.bf16.mxu0 0
        %2968 = vmatpush1.bf16.msra.mxu0 %v2809
        %2969 = vmatprep.subr.bf16.mxu0 0
        %2970 = vmatpush1.bf16.msra.mxu0 %v2810
        %2971 = vmatprep.subr.bf16.mxu0 0
        %2972 = vmatpush1.bf16.msra.mxu0 %v2811
        %2973 = vmatprep.subr.bf16.mxu0 0
        %2974 = vmatpush1.bf16.msra.mxu0 %v2812
        %2975 = vmatprep.subr.bf16.mxu0 0
        %2976 = vmatpush1.bf16.msra.mxu0 %v2813
        %2977 = vmatprep.subr.bf16.mxu0 0
        %2978 = vmatpush1.bf16.msra.mxu0 %v2814
        %2979 = vmatprep.subr.bf16.mxu0 0
        %2980 = vmatpush1.bf16.msra.mxu0 %v2815
        %2981 = vmatprep.subr.bf16.mxu0 0
        %2982 = vmatpush1.bf16.msra.mxu0 %v2816
        %2983 = vmatprep.subr.bf16.mxu0 0
        %2984 = vmatpush1.bf16.msra.mxu0 %v2817
        %2985 = vmatprep.subr.bf16.mxu0 0
        %2986 = vmatpush1.bf16.msra.mxu0 %v2818
        %2987 = vmatprep.mubr.bf16.mxu0 %v2397
        %2988 = vmatmul.mubr.bf16.gmra.mrb[0].mxu0 %v2396
        %v2989 = vpop.f32.mrb[0].mxu0
        %v2990 = vadd.f32 %v2950, %v2989
        %v2991 = vpop.f32.mrb[0].mxu0
        %v2992 = vpop.f32.mrb[0].mxu0
        %v2993 = vpop.f32.mrb[0].mxu0
        %2994 = vdwg.mxu0
        %2995 = vmatprep.subr.bf16.mxu0 0
        %2996 = vmatpush1.bf16.msra.mxu0 %v2819
        %2997 = vmatprep.subr.bf16.mxu0 0
        %2998 = vmatpush1.bf16.msra.mxu0 %v2820
        %2999 = vmatprep.subr.bf16.mxu0 0
        %3000 = vmatpush1.bf16.msra.mxu0 %v2821
        %3001 = vmatprep.subr.bf16.mxu0 0
        %3002 = vmatpush1.bf16.msra.mxu0 %v2822
        %3003 = vmatprep.subr.bf16.mxu0 0
        %3004 = vmatpush1.bf16.msra.mxu0 %v2823
        %3005 = vmatprep.subr.bf16.mxu0 0
        %3006 = vmatpush1.bf16.msra.mxu0 %v2824
        %3007 = vmatprep.subr.bf16.mxu0 0
        %3008 = vmatpush1.bf16.msra.mxu0 %v2825
        %3009 = vmatprep.subr.bf16.mxu0 0
        %3010 = vmatpush1.bf16.msra.mxu0 %v2826
        %3011 = vmatprep.subr.bf16.mxu0 0
        %3012 = vmatpush1.bf16.msra.mxu0 %v2827
        %3013 = vmatprep.subr.bf16.mxu0 0
        %3014 = vmatpush1.bf16.msra.mxu0 %v2828
        %3015 = vmatprep.subr.bf16.mxu0 0
        %3016 = vmatpush1.bf16.msra.mxu0 %v2829
        %3017 = vmatprep.subr.bf16.mxu0 0
        %3018 = vmatpush1.bf16.msra.mxu0 %v2830
        %3019 = vmatprep.subr.bf16.mxu0 0
        %3020 = vmatpush1.bf16.msra.mxu0 %v2831
        %3021 = vmatprep.subr.bf16.mxu0 0
        %3022 = vmatpush1.bf16.msra.mxu0 %v2832
        %3023 = vmatprep.subr.bf16.mxu0 0
        %3024 = vmatpush1.bf16.msra.mxu0 %v2833
        %3025 = vmatprep.subr.bf16.mxu0 0
        %3026 = vmatpush1.bf16.msra.mxu0 %v2834
        %3027 = vmatprep.mubr.bf16.mxu0 %v2399
        %3028 = vmatmul.mubr.bf16.gmra.mrb[0].mxu0 %v2398
        %v3029 = vpop.f32.mrb[0].mxu0
        %v3030 = vadd.f32 %v2990, %v3029
        %v3031 = vpop.f32.mrb[0].mxu0
        %v3032 = vpop.f32.mrb[0].mxu0
        %v3033 = vpop.f32.mrb[0].mxu0
        %3034 = vdwg.mxu0
        %3035 = vmatprep.subr.bf16.mxu0 0
        %3036 = vmatpush1.bf16.msra.mxu0 %v2835
        %3037 = vmatprep.subr.bf16.mxu0 0
        %3038 = vmatpush1.bf16.msra.mxu0 %v2836
        %3039 = vmatprep.subr.bf16.mxu0 0
        %3040 = vmatpush1.bf16.msra.mxu0 %v2837
        %3041 = vmatprep.subr.bf16.mxu0 0
        %3042 = vmatpush1.bf16.msra.mxu0 %v2838
        %3043 = vmatprep.subr.bf16.mxu0 0
        %3044 = vmatpush1.bf16.msra.mxu0 %v2839
        %3045 = vmatprep.subr.bf16.mxu0 0
        %3046 = vmatpush1.bf16.msra.mxu0 %v2840
        %3047 = vmatprep.subr.bf16.mxu0 0
        %3048 = vmatpush1.bf16.msra.mxu0 %v2841
        %3049 = vmatprep.subr.bf16.mxu0 0
        %3050 = vmatpush1.bf16.msra.mxu0 %v2842
        %3051 = vmatprep.subr.bf16.mxu0 0
        %3052 = vmatpush1.bf16.msra.mxu0 %v2843
        %3053 = vmatprep.subr.bf16.mxu0 0
        %3054 = vmatpush1.bf16.msra.mxu0 %v2844
        %3055 = vmatprep.subr.bf16.mxu0 0
        %3056 = vmatpush1.bf16.msra.mxu0 %v2845
        %3057 = vmatprep.subr.bf16.mxu0 0
        %3058 = vmatpush1.bf16.msra.mxu0 %v2846
        %3059 = vmatprep.subr.bf16.mxu0 0
        %3060 = vmatpush1.bf16.msra.mxu0 %v2847
        %3061 = vmatprep.subr.bf16.mxu0 0
        %3062 = vmatpush1.bf16.msra.mxu0 %v2848
        %3063 = vmatprep.subr.bf16.mxu0 0
        %3064 = vmatpush1.bf16.msra.mxu0 %v2849
        %3065 = vmatprep.subr.bf16.mxu0 0
        %3066 = vmatpush1.bf16.msra.mxu0 %v2850
        %3067 = vmatprep.mubr.bf16.mxu0 %v2401
        %3068 = vmatmul.mubr.bf16.gmra.mrb[0].mxu0 %v2400
        %v3069 = vpop.f32.mrb[0].mxu0
        %v3070 = vadd.f32 %v3030, %v3069
        %v3071 = vpop.f32.mrb[0].mxu0
        %v3072 = vpop.f32.mrb[0].mxu0
        %v3073 = vpop.f32.mrb[0].mxu0
        %3074 = vdwg.mxu0
        %v3075 = vmax.f32 %v3070, 0.0
        %v3076 = vpack.c.bf16 %v3075, %v3075
        %v3077 = vld [vmem:[%s10] sm:$0xf]
        %v3078 = vld [vmem:[%s10 + $0x4] sm:$0xf]
        %v3079 = vld [vmem:[%s10 + $0x8] sm:$0xf]
        %v3080 = vld [vmem:[%s10 + $0xc] sm:$0xf]
        %v3081 = vld [vmem:[%s10 + $0x10] sm:$0xf]
        %v3082 = vld [vmem:[%s10 + $0x14] sm:$0xf]
        %v3083 = vld [vmem:[%s10 + $0x18] sm:$0xf]
        %v3084 = vld [vmem:[%s10 + $0x1c] sm:$0xf]
        %v3085 = vld [vmem:[%s11] sm:$0x1]
        %v3094 = vunpack.c.l.b16 %v3077
        %v3095 = vunpack.c.l.b16 %v3078
        %v3096 = vunpack.c.l.b16 %v3079
        %v3097 = vunpack.c.l.b16 %v3080
        %v3098 = vunpack.c.l.b16 %v3081
        %v3099 = vunpack.c.l.b16 %v3082
        %v3100 = vunpack.c.l.b16 %v3083
        %v3101 = vunpack.c.l.b16 %v3084
        %v3102 = vpack.c.b16 %v3095, %v3094
        %v3103 = vpack.c.b16 %v3097, %v3096
        %v3104 = vpack.c.b16 %v3099, %v3098
        %v3105 = vpack.c.b16 %v3101, %v3100
        %vm3110 = vcmask 523264
        %v3112 = vsel %vm3110, %v3076, 0
        %3114 = vmatprep.subr.bf16.mxu0 0
        %3115 = vmatpush1.bf16.msra.mxu0 %v3102
        %3116 = vmatprep.subr.bf16.mxu0 0
        %3117 = vmatpush1.bf16.msra.mxu0 %v3103
        %3118 = vmatprep.subr.bf16.mxu0 0
        %3119 = vmatpush1.bf16.msra.mxu0 %v3104
        %3120 = vmatprep.subr.bf16.mxu0 0
        %3121 = vmatpush1.bf16.msra.mxu0 %v3105
        %3122 = vmatprep.subr.bf16.mxu0 0
        %3123 = vmatpush1.bf16.msra.mxu0 0
        %3124 = vmatprep.subr.bf16.mxu0 0
        %3125 = vmatpush1.bf16.msra.mxu0 0
        %3126 = vmatprep.subr.bf16.mxu0 0
        %3127 = vmatpush1.bf16.msra.mxu0 0
        %3128 = vmatprep.subr.bf16.mxu0 0
        %3129 = vmatpush1.bf16.msra.mxu0 0
        %3130 = vmatprep.subr.bf16.mxu0 0
        %3131 = vmatpush1.bf16.msra.mxu0 0
        %3132 = vmatprep.subr.bf16.mxu0 0
        %3133 = vmatpush1.bf16.msra.mxu0 0
        %3134 = vmatprep.subr.bf16.mxu0 0
        %3135 = vmatpush1.bf16.msra.mxu0 0
        %3136 = vmatprep.subr.bf16.mxu0 0
        %3137 = vmatpush1.bf16.msra.mxu0 0
        %3138 = vmatprep.subr.bf16.mxu0 0
        %3139 = vmatpush1.bf16.msra.mxu0 0
        %3140 = vmatprep.subr.bf16.mxu0 0
        %3141 = vmatpush1.bf16.msra.mxu0 0
        %3142 = vmatprep.subr.bf16.mxu0 0
        %3143 = vmatpush1.bf16.msra.mxu0 0
        %3144 = vmatprep.subr.bf16.mxu0 0
        %3145 = vmatpush1.bf16.msra.mxu0 0
        %3146 = vmatprep.mubr.bf16.mxu0 0
        %3147 = vmatmul.mubr.bf16.gmra.mrb[0].mxu0 %v3112
        %v3148 = vpop.f32.mrb[0].mxu0
        %v3149 = vadd.f32 %v3085, %v3148
        %v3150 = vpop.f32.mrb[0].mxu0
        %v3151 = vpop.f32.mrb[0].mxu0
        %v3152 = vpop.f32.mrb[0].mxu0
        %3153 = vdwg.mxu0
        %vm3154 = vcmask 49152
        %v3155 = vsel %vm3154, %v3149, -inf
        %3156 = vmax.xlane.f32.xlu0 %v3155
        %v3157 = vpop.xlane.xlu0 %3156
        %v3158 = vsub.f32 %v3149, %v3157
        %v3159 = vmul.f32 %v3158, 1.442695
        %v3160 = vpow.pop %v3159
        %v3161 = vsel %vm3154, %v3160, 0.0
        %3162 = vadd.xlane.f32.xlu0 %v3161
        %v3163 = vpop.xlane.xlu0 %3162
        %v3164 = vlog2.pop %v3163
        %v3165 = vmul.f32 %v3164, 0.6931472
        %v3166 = vadd.f32 %v3157, %v3165
        %v3167 = vsub.f32 %v3149, %v3166
        %3168 = vst.msk [vmem:[%s408] sm:$0x1] %vm3154, %v3167
        %s3169 = sand.u32 %s291, 1
        %s3170 = scalar_lea.sflag [#allocation3], %s3169
        %s3171 = sand.u32 %s291, 1
        %s3172 = scalar_lea.vmem [#allocation2], %s3171
        // Predicated region
        $region69: #{cnn_forward.1} parent=67 // pred_check
          %p3173 = pneg %p301
        $region70: #{cnn_forward.1} parent=67 // pred_check_branch
          %3175 = sbr.rel (%p3173) target = $region72
        $region71: #{cnn_forward.1} parent=67 // pred_region
          %s3177 = ssub.s32 16, 16
          %3178 = vsyncadd %s3170, %s3177
          %s3179 = smul.addr %s26, 16
          %s3180 = scalar_lea.hbm %s12, %s3179
          %s3182 = sshll.u32 %s3172, 4
          %s3183 = int_to_ptr.vmem [resolvable:$true] %s3182
          %3185 = dma.vmem_to_hbm [thread:$0]  %s3183, 16, %s3180, %s3170
        $region72: #{cnn_forward.1} parent=67 // pred_fallthru
          _
      $region68: #{cnn_forward.1} parent=5 // pred_fallthru
        _
      %p3186 = scmp.le.s32.totalorder 2, %s21
      // Predicated region
      $region73: #{cnn_forward.1} parent=5 // pred_check
        %p3187 = pneg %p3186
      $region74: #{cnn_forward.1} parent=5 // pred_check_branch
        %3189 = sbr.rel (%p3187) target = $region76
      $region75: #{cnn_forward.1} parent=5 // pred_region
        %s3190 = ssub.s32 %s21, 2
        // Predicated region
        $region77: #{cnn_forward.1} parent=75 // pred_check
          %p3191 = pneg %p307
        $region78: #{cnn_forward.1} parent=75 // pred_check_branch
          %3193 = sbr.rel (%p3191) target = $region80
        $region79: #{cnn_forward.1} parent=75 // pred_region
          %s3194 = sand.u32 %s292, 1
          %s3195 = scalar_lea.sflag [#allocation3], %s3194
          %s3196 = sand.u32 %s292, 1
          %s3197 = scalar_lea.vmem [#allocation2], %s3196
          %3198 = dma.done %s3195, 16
        $region80: #{cnn_forward.1} parent=75 // pred_fallthru
          _
      $region76: #{cnn_forward.1} parent=5 // pred_fallthru
        _
    $region6: #{cnn_forward.1} parent=1 // loop_footer
      %s25 = sadd.s32 1, %s21
    $region7: #{cnn_forward.1} parent=1 // loop_footer_branch
      %20 = sbr.rel target = $region3
    $region8: #{cnn_forward.1} parent=1 // loop_exit
      _
    %3199 = vsyncpa [#allocation3], 1
    %s3200 = scalar_lea.sflag [#allocation3], 1
    %3201 = vsyncpa %s3200, 1

</llo_original>
